<compile_context>
chip_gen: v7x
topology: tpu7x:2x2x1
jax: 0.10.0
libtpu: 0.0.40
codegen_flags: <defaults>
</compile_context>

<pallas_src>
import functools

import jax
import jax.numpy as jnp
from jax import lax
from jax.experimental import pallas as pl
from jax.experimental.pallas import tpu as pltpu

_SQRT2 = 1.4142135623730951
_LANE = 128
_COMPUTE_DTYPE = jnp.bfloat16   # matmul-input dtype; accumulation is f32


def _round_up(x, m):
    return (x + m - 1) // m * m


def _gelu_exact(x):
    # PyTorch nn.GELU() default: exact erf-based GELU (computed in f32).
    return 0.5 * x * (1.0 + lax.erf(x / _SQRT2))


def _mlp_kernel(d_ref, t_ref, w1a_ref, w1b_ref, b1_ref, w2_ref, b2_ref,
                w3_ref, b3_ref, out_ref, link_ref):
    # Layer 0: concat([d, t]) @ W1 + b1  == d @ W1[:ED] + t @ W1[ED:] + b1
    h1 = jnp.dot(d_ref[...], w1a_ref[...], preferred_element_type=jnp.float32)
    h1 = h1 + jnp.dot(t_ref[...], w1b_ref[...],
                      preferred_element_type=jnp.float32)
    h1 = _gelu_exact(h1 + b1_ref[...])

    # Layer 1: Linear(1024 -> 512) + GELU   (dropout = identity in eval)
    h2 = jnp.dot(h1.astype(w2_ref.dtype), w2_ref[...],
                 preferred_element_type=jnp.float32) + b2_ref[...]
    h2 = _gelu_exact(h2)
    link_ref[...] = h2.astype(link_ref.dtype)

    # Layer 2: Linear(512 -> out_pad)  (out_dim zero-padded to 128 lanes;
    # real columns sliced out in the wrapper). Lane-dense store.
    out = jnp.dot(h2.astype(w3_ref.dtype), w3_ref[...],
                  preferred_element_type=jnp.float32) + b3_ref[...]
    out_ref[...] = out.astype(out_ref.dtype)


@functools.partial(jax.jit, static_argnames=())
def predict_module_forward(drug_id, target_id, drug_embedding, target_embedding,
                           params):
    """Pallas implementation of PredictModule.forward (eval mode).

    Returns (out [B, output_dim], link_embeddings [B, 512])."""
    # --- glue: embedding gathers (tiny; fused by XLA with the pads/casts) ---
    drug_feature = jnp.take(drug_embedding, drug_id.astype(jnp.int32), axis=0)
    target_feature = jnp.take(target_embedding, target_id.astype(jnp.int32), axis=0)

    w1, b1, w2, b2, w3, b3 = (params["w1"], params["b1"], params["w2"],
                              params["b2"], params["w3"], params["b3"])
    ED = drug_embedding.shape[1]
    B = drug_feature.shape[0]
    h1_dim, h2_dim, out_dim = w1.shape[1], w2.shape[1], w3.shape[1]

    # --- batch tiling: pad B to a multiple of the row tile (>= 8 sublanes) ---
    bm = min(128, _round_up(max(B, 1), 8))
    B_pad = _round_up(B, bm)
    if B_pad != B:
        pad_rows = B_pad - B
        drug_feature = jnp.pad(drug_feature, ((0, pad_rows), (0, 0)))
        target_feature = jnp.pad(target_feature, ((0, pad_rows), (0, 0)))

    # --- lane-dense final layer: zero-pad out_dim up to 128 lanes ---
    out_pad = _round_up(out_dim, _LANE)
    w3p = jnp.pad(w3, ((0, 0), (0, out_pad - out_dim)))
    b3p = jnp.pad(b3, ((0, out_pad - out_dim),))

    # --- bf16 matmul inputs (f32 accumulation inside the kernel) ---
    d = drug_feature.astype(_COMPUTE_DTYPE)
    t = target_feature.astype(_COMPUTE_DTYPE)
    w1a = w1[:ED].astype(_COMPUTE_DTYPE)     # split-W1: drug half
    w1b = w1[ED:].astype(_COMPUTE_DTYPE)     # split-W1: target half
    w2c = w2.astype(_COMPUTE_DTYPE)
    w3c = w3p.astype(_COMPUTE_DTYPE)

    # biases as [1, dim] rows, kept in f32 (they add into the f32 accumulator)
    b1r = b1.reshape(1, h1_dim).astype(jnp.float32)
    b2r = b2.reshape(1, h2_dim).astype(jnp.float32)
    b3r = b3p.reshape(1, out_pad).astype(jnp.float32)

    n_tiles = B_pad // bm
    row_map = lambda i: (i, 0)     # batch-tiled operands / outputs
    const_map = lambda i: (0, 0)   # weights/biases: resident across the grid

    out_p, link_p = pl.pallas_call(
        _mlp_kernel,
        out_shape=(
            jax.ShapeDtypeStruct((B_pad, out_pad), jnp.float32),
            jax.ShapeDtypeStruct((B_pad, h2_dim), jnp.float32),
        ),
        grid=(n_tiles,),
        in_specs=[
            pl.BlockSpec((bm, ED), row_map),          # drug features
            pl.BlockSpec((bm, ED), row_map),          # target features
            pl.BlockSpec((ED, h1_dim), const_map),    # W1[:ED]
            pl.BlockSpec((ED, h1_dim), const_map),    # W1[ED:]
            pl.BlockSpec((1, h1_dim), const_map),     # b1
            pl.BlockSpec((h1_dim, h2_dim), const_map),  # W2
            pl.BlockSpec((1, h2_dim), const_map),     # b2
            pl.BlockSpec((h2_dim, out_pad), const_map),  # W3 (lane-padded)
            pl.BlockSpec((1, out_pad), const_map),    # b3 (lane-padded)
        ],
        out_specs=(
            pl.BlockSpec((bm, out_pad), row_map),
            pl.BlockSpec((bm, h2_dim), row_map),
        ),
        compiler_params=pltpu.CompilerParams(
            dimension_semantics=("parallel",)),       # v7x: split batch over 2 TCs
    )(d, t, w1a, w1b, b1r, w2c, b2r, w3c, b3r)

    return out_p[:B, :out_dim], link_p[:B, :h2_dim]


def init_params(key, embedding_dim, output_dim=1):
    """Deterministic init mimicking nn.Linear defaults (uniform +-1/sqrt(fan_in))."""
    dims = [2 * embedding_dim, 1024, 512, output_dim]
    names = ["1", "2", "3"]
    params = {}
    for i, n in enumerate(names):
        fan_in, fan_out = dims[i], dims[i + 1]
        key, kw, kb = jax.random.split(key, 3)
        bound = 1.0 / (fan_in ** 0.5)
        params["w" + n] = jax.random.uniform(
            kw, (fan_in, fan_out), jnp.float32, -bound, bound)
        params["b" + n] = jax.random.uniform(
            kb, (fan_out,), jnp.float32, -bound, bound)
    return params


if __name__ == "__main__":
    key = jax.random.PRNGKey(0)

    embedding_dim = 128      # small, TPU-lane aligned
    output_dim = 1
    num_drugs = 16
    num_targets = 16
    batch = 8

    key, k_d, k_t, k_id1, k_id2, k_p = jax.random.split(key, 6)
    drug_embedding = jax.random.normal(k_d, (num_drugs, embedding_dim), jnp.float32)
    target_embedding = jax.random.normal(k_t, (num_targets, embedding_dim), jnp.float32)
    drug_id = jax.random.randint(k_id1, (batch,), 0, num_drugs, jnp.int32)
    target_id = jax.random.randint(k_id2, (batch,), 0, num_targets, jnp.int32)

    params = init_params(k_p, embedding_dim, output_dim)

    out, link = predict_module_forward(drug_id, target_id,
                                       drug_embedding, target_embedding, params)
    out = jax.block_until_ready(out)
    link = jax.block_until_ready(link)

    # sanity checks vs a pure-f32 JAX reference (module semantics, eval mode)
    x = jnp.concatenate([drug_embedding[drug_id], target_embedding[target_id]], -1)
    h1 = jax.nn.gelu(x @ params["w1"] + params["b1"], approximate=False)
    h2 = jax.nn.gelu(h1 @ params["w2"] + params["b2"], approximate=False)
    ref_out = h2 @ params["w3"] + params["b3"]

    assert out.shape == (batch, output_dim)
    assert link.shape == (batch, 512)
    # bf16 matmul inputs (f32 accumulation) -> tolerance loosened vs the f32 ref.
    assert jnp.allclose(out, ref_out, atol=2e-2, rtol=2e-2), \
        float(jnp.max(jnp.abs(out - ref_out)))
    assert jnp.allclose(link, h2, atol=2e-2, rtol=2e-2), \
        float(jnp.max(jnp.abs(link - h2)))

    print("KERNEL_OK")
</pallas_src>

<mosaic_0001>
module attributes {stable_mosaic.version = 11 : i64} {
  func.func @_mlp_kernel(%arg0: i32, %arg1: memref<8x128xbf16, #tpu.memory_space<vmem>>, %arg2: memref<8x128xbf16, #tpu.memory_space<vmem>>, %arg3: memref<128x1024xbf16, #tpu.memory_space<vmem>>, %arg4: memref<128x1024xbf16, #tpu.memory_space<vmem>>, %arg5: memref<1x1024xf32, #tpu.memory_space<vmem>>, %arg6: memref<1024x512xbf16, #tpu.memory_space<vmem>>, %arg7: memref<1x512xf32, #tpu.memory_space<vmem>>, %arg8: memref<512x128xbf16, #tpu.memory_space<vmem>>, %arg9: memref<1x128xf32, #tpu.memory_space<vmem>>, %arg10: memref<8x128xf32, #tpu.memory_space<vmem>>, %arg11: memref<8x512xf32, #tpu.memory_space<vmem>>) attributes {dimension_semantics = [#tpu.dimension_semantics<parallel>], iteration_bounds = array<i64: 1>, scalar_prefetch = 0 : i64, scratch_operands = 0 : i64, tpu.core_type = #tpu.core_type<tc>, window_params = [{transform_indices = @transform_0, window_bounds = array<i64: 8, 128>}, {transform_indices = @transform_1, window_bounds = array<i64: 8, 128>}, {pipeline_mode = #tpu.pipeline_mode<synchronous>, transform_indices = @transform_2, window_bounds = array<i64: 128, 1024>}, {pipeline_mode = #tpu.pipeline_mode<synchronous>, transform_indices = @transform_3, window_bounds = array<i64: 128, 1024>}, {pipeline_mode = #tpu.pipeline_mode<synchronous>, transform_indices = @transform_4, window_bounds = array<i64: 1, 1024>}, {pipeline_mode = #tpu.pipeline_mode<synchronous>, transform_indices = @transform_5, window_bounds = array<i64: 1024, 512>}, {pipeline_mode = #tpu.pipeline_mode<synchronous>, transform_indices = @transform_6, window_bounds = array<i64: 1, 512>}, {pipeline_mode = #tpu.pipeline_mode<synchronous>, transform_indices = @transform_7, window_bounds = array<i64: 512, 128>}, {pipeline_mode = #tpu.pipeline_mode<synchronous>, transform_indices = @transform_8, window_bounds = array<i64: 1, 128>}, {transform_indices = @transform_9, window_bounds = array<i64: 8, 128>}, {transform_indices = @transform_10, window_bounds = array<i64: 8, 512>}]} {
    %c0 = arith.constant 0 : index
    %c0_0 = arith.constant 0 : index
    %0 = vector.load %arg1[%c0, %c0_0] : memref<8x128xbf16, #tpu.memory_space<vmem>>, vector<8x128xbf16>
    %c0_1 = arith.constant 0 : index
    %c0_2 = arith.constant 0 : index
    %1 = vector.load %arg3[%c0_1, %c0_2] : memref<128x1024xbf16, #tpu.memory_space<vmem>>, vector<128x1024xbf16>
    %cst = arith.constant dense<0.000000e+00> : vector<8x1024xf32>
    %2 = tpu.matmul %0, %1, %cst {dimension_numbers = #tpu.dot_dimension_numbers<[1], [0], [0], [1], [0, 0, 1, 1], [], []>} : vector<8x128xbf16>, vector<128x1024xbf16>, vector<8x1024xf32> -> vector<8x1024xf32>
    %c0_3 = arith.constant 0 : index
    %c0_4 = arith.constant 0 : index
    %3 = vector.load %arg2[%c0_3, %c0_4] : memref<8x128xbf16, #tpu.memory_space<vmem>>, vector<8x128xbf16>
    %c0_5 = arith.constant 0 : index
    %c0_6 = arith.constant 0 : index
    %4 = vector.load %arg4[%c0_5, %c0_6] : memref<128x1024xbf16, #tpu.memory_space<vmem>>, vector<128x1024xbf16>
    %cst_7 = arith.constant dense<0.000000e+00> : vector<8x1024xf32>
    %5 = tpu.matmul %3, %4, %cst_7 {dimension_numbers = #tpu.dot_dimension_numbers<[1], [0], [0], [1], [0, 0, 1, 1], [], []>} : vector<8x128xbf16>, vector<128x1024xbf16>, vector<8x1024xf32> -> vector<8x1024xf32>
    %6 = arith.addf %2, %5 : vector<8x1024xf32>
    %c0_8 = arith.constant 0 : index
    %c0_9 = arith.constant 0 : index
    %7 = vector.load %arg5[%c0_8, %c0_9] : memref<1x1024xf32, #tpu.memory_space<vmem>>, vector<1x1024xf32>
    %8 = vector.broadcast %7 : vector<1x1024xf32> to vector<8x1024xf32>
    %9 = arith.addf %6, %8 : vector<8x1024xf32>
    %cst_10 = arith.constant 5.000000e-01 : f32
    %10 = vector.broadcast %cst_10 : f32 to vector<8x1024xf32>
    %11 = arith.mulf %10, %9 : vector<8x1024xf32>
    %cst_11 = arith.constant 1.41421354 : f32
    %12 = vector.broadcast %cst_11 : f32 to vector<8x1024xf32>
    %13 = arith.divf %9, %12 : vector<8x1024xf32>
    %14 = math.erf %13 : vector<8x1024xf32>
    %cst_12 = arith.constant 1.000000e+00 : f32
    %15 = vector.broadcast %cst_12 : f32 to vector<8x1024xf32>
    %16 = arith.addf %15, %14 : vector<8x1024xf32>
    %17 = arith.mulf %11, %16 : vector<8x1024xf32>
    %18 = arith.truncf %17 : vector<8x1024xf32> to vector<8x1024xbf16>
    %c0_13 = arith.constant 0 : index
    %c0_14 = arith.constant 0 : index
    %19 = vector.load %arg6[%c0_13, %c0_14] : memref<1024x512xbf16, #tpu.memory_space<vmem>>, vector<1024x512xbf16>
    %cst_15 = arith.constant dense<0.000000e+00> : vector<8x512xf32>
    %20 = tpu.matmul %18, %19, %cst_15 {dimension_numbers = #tpu.dot_dimension_numbers<[1], [0], [0], [1], [0, 0, 1, 1], [], []>} : vector<8x1024xbf16>, vector<1024x512xbf16>, vector<8x512xf32> -> vector<8x512xf32>
    %c0_16 = arith.constant 0 : index
    %c0_17 = arith.constant 0 : index
    %21 = vector.load %arg7[%c0_16, %c0_17] : memref<1x512xf32, #tpu.memory_space<vmem>>, vector<1x512xf32>
    %22 = vector.broadcast %21 : vector<1x512xf32> to vector<8x512xf32>
    %23 = arith.addf %20, %22 : vector<8x512xf32>
    %cst_18 = arith.constant 5.000000e-01 : f32
    %24 = vector.broadcast %cst_18 : f32 to vector<8x512xf32>
    %25 = arith.mulf %24, %23 : vector<8x512xf32>
    %cst_19 = arith.constant 1.41421354 : f32
    %26 = vector.broadcast %cst_19 : f32 to vector<8x512xf32>
    %27 = arith.divf %23, %26 : vector<8x512xf32>
    %28 = math.erf %27 : vector<8x512xf32>
    %cst_20 = arith.constant 1.000000e+00 : f32
    %29 = vector.broadcast %cst_20 : f32 to vector<8x512xf32>
    %30 = arith.addf %29, %28 : vector<8x512xf32>
    %31 = arith.mulf %25, %30 : vector<8x512xf32>
    %c0_21 = arith.constant 0 : index
    %c0_22 = arith.constant 0 : index
    %32 = vector.load %arg11[%c0_21, %c0_22] : memref<8x512xf32, #tpu.memory_space<vmem>>, vector<8x512xf32>
    tpu.vector_store %arg11[%c0_21, %c0_22], %31 {strides = array<i32>} : memref<8x512xf32, #tpu.memory_space<vmem>>, vector<8x512xf32>,
    %33 = arith.truncf %31 : vector<8x512xf32> to vector<8x512xbf16>
    %c0_23 = arith.constant 0 : index
    %c0_24 = arith.constant 0 : index
    %34 = vector.load %arg8[%c0_23, %c0_24] : memref<512x128xbf16, #tpu.memory_space<vmem>>, vector<512x128xbf16>
    %cst_25 = arith.constant dense<0.000000e+00> : vector<8x128xf32>
    %35 = tpu.matmul %33, %34, %cst_25 {dimension_numbers = #tpu.dot_dimension_numbers<[1], [0], [0], [1], [0, 0, 1, 1], [], []>} : vector<8x512xbf16>, vector<512x128xbf16>, vector<8x128xf32> -> vector<8x128xf32>
    %c0_26 = arith.constant 0 : index
    %c0_27 = arith.constant 0 : index
    %36 = vector.load %arg9[%c0_26, %c0_27] : memref<1x128xf32, #tpu.memory_space<vmem>>, vector<1x128xf32>
    %37 = vector.broadcast %36 : vector<1x128xf32> to vector<8x128xf32>
    %38 = arith.addf %35, %37 : vector<8x128xf32>
    %c0_28 = arith.constant 0 : index
    %c0_29 = arith.constant 0 : index
    %39 = vector.load %arg10[%c0_28, %c0_29] : memref<8x128xf32, #tpu.memory_space<vmem>>, vector<8x128xf32>
    tpu.vector_store %arg10[%c0_28, %c0_29], %38 {strides = array<i32>} : memref<8x128xf32, #tpu.memory_space<vmem>>, vector<8x128xf32>,
    return
  }
  func.func @transform_0(%arg0: i32) -> (i32, i32) {
    %c0_i32 = arith.constant 0 : i32
    %c0_i32_0 = arith.constant 0 : i32
    return %arg0, %c0_i32 : i32, i32
  }
  func.func @transform_1(%arg0: i32) -> (i32, i32) {
    %c0_i32 = arith.constant 0 : i32
    %c0_i32_0 = arith.constant 0 : i32
    return %arg0, %c0_i32 : i32, i32
  }
  func.func @transform_2(%arg0: i32) -> (i32, i32) {
    %c0_i32 = arith.constant 0 : i32
    %c0_i32_0 = arith.constant 0 : i32
    %c0_i32_1 = arith.constant 0 : i32
    return %c0_i32, %c0_i32_0 : i32, i32
  }
  func.func @transform_3(%arg0: i32) -> (i32, i32) {
    %c0_i32 = arith.constant 0 : i32
    %c0_i32_0 = arith.constant 0 : i32
    %c0_i32_1 = arith.constant 0 : i32
    return %c0_i32, %c0_i32_0 : i32, i32
  }
  func.func @transform_4(%arg0: i32) -> (i32, i32) {
    %c0_i32 = arith.constant 0 : i32
    %c0_i32_0 = arith.constant 0 : i32
    %c0_i32_1 = arith.constant 0 : i32
    return %c0_i32, %c0_i32_0 : i32, i32
  }
  func.func @transform_5(%arg0: i32) -> (i32, i32) {
    %c0_i32 = arith.constant 0 : i32
    %c0_i32_0 = arith.constant 0 : i32
    %c0_i32_1 = arith.constant 0 : i32
    return %c0_i32, %c0_i32_0 : i32, i32
  }
  func.func @transform_6(%arg0: i32) -> (i32, i32) {
    %c0_i32 = arith.constant 0 : i32
    %c0_i32_0 = arith.constant 0 : i32
    %c0_i32_1 = arith.constant 0 : i32
    return %c0_i32, %c0_i32_0 : i32, i32
  }
  func.func @transform_7(%arg0: i32) -> (i32, i32) {
    %c0_i32 = arith.constant 0 : i32
    %c0_i32_0 = arith.constant 0 : i32
    %c0_i32_1 = arith.constant 0 : i32
    return %c0_i32, %c0_i32_0 : i32, i32
  }
  func.func @transform_8(%arg0: i32) -> (i32, i32) {
    %c0_i32 = arith.constant 0 : i32
    %c0_i32_0 = arith.constant 0 : i32
    %c0_i32_1 = arith.constant 0 : i32
    return %c0_i32, %c0_i32_0 : i32, i32
  }
  func.func @transform_9(%arg0: i32) -> (i32, i32) {
    %c0_i32 = arith.constant 0 : i32
    %c0_i32_0 = arith.constant 0 : i32
    return %arg0, %c0_i32 : i32, i32
  }
  func.func @transform_10(%arg0: i32) -> (i32, i32) {
    %c0_i32 = arith.constant 0 : i32
    %c0_i32_0 = arith.constant 0 : i32
    return %arg0, %c0_i32 : i32, i32
  }
}

</mosaic_0001>

<llo_original>
// kernel: predict_module_forward.1
$region0: #{predict_module_forward.1}
  #allocation0 [shape = 'u32[]', space=smem, size = 0x4, offset = 0x4, fixed_abs, tag = 'smem constant byte address 0x4 - core index']
  #allocation1 [shape = 'u32[144,128]{1,0:T(1,128)}', space=vmem, size = 0x12000, scoped, tag = 'internal scratch']
  %s0 = inlined_call_operand.vmem [shape: bf16[8,128], index: 0, kind: input, shape index: {}]
  %s1 = inlined_call_operand.vmem [shape: bf16[8,128], index: 1, kind: input, shape index: {}]
  %s2 = inlined_call_operand.vmem [shape: bf16[128,1024], index: 2, kind: input, shape index: {}]
  %s3 = inlined_call_operand.vmem [shape: bf16[128,1024], index: 3, kind: input, shape index: {}]
  %s4 = inlined_call_operand.vmem [shape: f32[1,1024], index: 4, kind: input, shape index: {}]
  %s5 = inlined_call_operand.vmem [shape: bf16[1024,512], index: 5, kind: input, shape index: {}]
  %s6 = inlined_call_operand.vmem [shape: f32[1,512], index: 6, kind: input, shape index: {}]
  %s7 = inlined_call_operand.vmem [shape: bf16[512,128], index: 7, kind: input, shape index: {}]
  %s8 = inlined_call_operand.vmem [shape: f32[1,128], index: 8, kind: input, shape index: {}]
  %s9 = inlined_call_operand.vmem [shape: f32[8,128], index: 9, kind: output, shape index: {0}]
  %s10 = inlined_call_operand.hbm [shape: f32[8,512], index: 10, kind: output, shape index: {1}]
  %11 = xla_tuple %s9, %s10
  %s12 = sld [smem:[#allocation0]]
  $region54: #{predict_module_forward.1} parent=0
    _
  %s14 = ssub.s32 1, %s12
  %s15 = scalar_select 0, %s14, %s12
  $region1: #{predict_module_forward.1} parent=0
    #allocation2 [shape = 'u8[16384]{0}', space=vmem, size = 0x4000, scoped, tag = 'output window, operand 1, single buffered']
    #allocation3 [shape = 's32[1]{0}', space=sflag, size = 0x4, scoped, tag = 'scoped memory for predict_module_forward.1']
    %16 = vsyncpa [#allocation3], 0
    // Predicated region
    $region2: #{predict_module_forward.1} parent=1 // pred_check
      _
    $region3: #{predict_module_forward.1} parent=1 // pred_check_branch
      %18 = sbr.rel (0) target = $region5
    $region4: #{predict_module_forward.1} parent=1 // pred_region
      _
    $region5: #{predict_module_forward.1} parent=1 // pred_fallthru
      _
    // Predicated region
    $region6: #{predict_module_forward.1} parent=1 // pred_check
      _
    $region7: #{predict_module_forward.1} parent=1 // pred_check_branch
      %20 = sbr.rel (0) target = $region9
    $region8: #{predict_module_forward.1} parent=1 // pred_region
      _
    $region9: #{predict_module_forward.1} parent=1 // pred_fallthru
      _
    // Predicated region
    $region10: #{predict_module_forward.1} parent=1 // pred_check
      _
    $region11: #{predict_module_forward.1} parent=1 // pred_check_branch
      %22 = sbr.rel (0) target = $region13
    $region12: #{predict_module_forward.1} parent=1 // pred_region
      _
    $region13: #{predict_module_forward.1} parent=1 // pred_fallthru
      _
    // Predicated region
    $region14: #{predict_module_forward.1} parent=1 // pred_check
      _
    $region15: #{predict_module_forward.1} parent=1 // pred_check_branch
      %24 = sbr.rel (0) target = $region17
    $region16: #{predict_module_forward.1} parent=1 // pred_region
      _
    $region17: #{predict_module_forward.1} parent=1 // pred_fallthru
      _
    // Predicated region
    $region18: #{predict_module_forward.1} parent=1 // pred_check
      _
    $region19: #{predict_module_forward.1} parent=1 // pred_check_branch
      %26 = sbr.rel (0) target = $region21
    $region20: #{predict_module_forward.1} parent=1 // pred_region
      _
    $region21: #{predict_module_forward.1} parent=1 // pred_fallthru
      _
    // Predicated region
    $region22: #{predict_module_forward.1} parent=1 // pred_check
      _
    $region23: #{predict_module_forward.1} parent=1 // pred_check_branch
      %28 = sbr.rel (0) target = $region25
    $region24: #{predict_module_forward.1} parent=1 // pred_region
      _
    $region25: #{predict_module_forward.1} parent=1 // pred_fallthru
      _
    // Predicated region
    $region26: #{predict_module_forward.1} parent=1 // pred_check
      _
    $region27: #{predict_module_forward.1} parent=1 // pred_check_branch
      %30 = sbr.rel (0) target = $region29
    $region28: #{predict_module_forward.1} parent=1 // pred_region
      _
    $region29: #{predict_module_forward.1} parent=1 // pred_fallthru
      _
    // Predicated region
    $region30: #{predict_module_forward.1} parent=1 // pred_check
      _
    $region31: #{predict_module_forward.1} parent=1 // pred_check_branch
      %32 = sbr.rel (0) target = $region33
    $region32: #{predict_module_forward.1} parent=1 // pred_region
      _
    $region33: #{predict_module_forward.1} parent=1 // pred_fallthru
      _
    // Predicated region
    $region34: #{predict_module_forward.1} parent=1 // pred_check
      _
    $region35: #{predict_module_forward.1} parent=1 // pred_check_branch
      %34 = sbr.rel (0) target = $region37
    $region36: #{predict_module_forward.1} parent=1 // pred_region
      _
    $region37: #{predict_module_forward.1} parent=1 // pred_fallthru
      _
    %v36 = vld [vmem:[%s0] sm:$0xf]
    %v37 = vld [vmem:[%s2] sm:$0xff]
    %v38 = vld [vmem:[%s2 + $0x8] sm:$0xff]
    %v39 = vld [vmem:[%s2 + $0x10] sm:$0xff]
    %v40 = vld [vmem:[%s2 + $0x18] sm:$0xff]
    %v41 = vld [vmem:[%s2 + $0x20] sm:$0xff]
    %v42 = vld [vmem:[%s2 + $0x28] sm:$0xff]
    %v43 = vld [vmem:[%s2 + $0x30] sm:$0xff]
    %v44 = vld [vmem:[%s2 + $0x38] sm:$0xff]
    %v45 = vld [vmem:[%s2 + $0x40] sm:$0xff]
    %v46 = vld [vmem:[%s2 + $0x48] sm:$0xff]
    %v47 = vld [vmem:[%s2 + $0x50] sm:$0xff]
    %v48 = vld [vmem:[%s2 + $0x58] sm:$0xff]
    %v49 = vld [vmem:[%s2 + $0x60] sm:$0xff]
    %v50 = vld [vmem:[%s2 + $0x68] sm:$0xff]
    %v51 = vld [vmem:[%s2 + $0x70] sm:$0xff]
    %v52 = vld [vmem:[%s2 + $0x78] sm:$0xff]
    %v53 = vld [vmem:[%s2 + $0x80] sm:$0xff]
    %v54 = vld [vmem:[%s2 + $0x88] sm:$0xff]
    %v55 = vld [vmem:[%s2 + $0x90] sm:$0xff]
    %v56 = vld [vmem:[%s2 + $0x98] sm:$0xff]
    %v57 = vld [vmem:[%s2 + $0xa0] sm:$0xff]
    %v58 = vld [vmem:[%s2 + $0xa8] sm:$0xff]
    %v59 = vld [vmem:[%s2 + $0xb0] sm:$0xff]
    %v60 = vld [vmem:[%s2 + $0xb8] sm:$0xff]
    %v61 = vld [vmem:[%s2 + $0xc0] sm:$0xff]
    %v62 = vld [vmem:[%s2 + $0xc8] sm:$0xff]
    %v63 = vld [vmem:[%s2 + $0xd0] sm:$0xff]
    %v64 = vld [vmem:[%s2 + $0xd8] sm:$0xff]
    %v65 = vld [vmem:[%s2 + $0xe0] sm:$0xff]
    %v66 = vld [vmem:[%s2 + $0xe8] sm:$0xff]
    %v67 = vld [vmem:[%s2 + $0xf0] sm:$0xff]
    %v68 = vld [vmem:[%s2 + $0xf8] sm:$0xff]
    %v69 = vld [vmem:[%s2 + $0x100] sm:$0xff]
    %v70 = vld [vmem:[%s2 + $0x108] sm:$0xff]
    %v71 = vld [vmem:[%s2 + $0x110] sm:$0xff]
    %v72 = vld [vmem:[%s2 + $0x118] sm:$0xff]
    %v73 = vld [vmem:[%s2 + $0x120] sm:$0xff]
    %v74 = vld [vmem:[%s2 + $0x128] sm:$0xff]
    %v75 = vld [vmem:[%s2 + $0x130] sm:$0xff]
    %v76 = vld [vmem:[%s2 + $0x138] sm:$0xff]
    %v77 = vld [vmem:[%s2 + $0x140] sm:$0xff]
    %v78 = vld [vmem:[%s2 + $0x148] sm:$0xff]
    %v79 = vld [vmem:[%s2 + $0x150] sm:$0xff]
    %v80 = vld [vmem:[%s2 + $0x158] sm:$0xff]
    %v81 = vld [vmem:[%s2 + $0x160] sm:$0xff]
    %v82 = vld [vmem:[%s2 + $0x168] sm:$0xff]
    %v83 = vld [vmem:[%s2 + $0x170] sm:$0xff]
    %v84 = vld [vmem:[%s2 + $0x178] sm:$0xff]
    %v85 = vld [vmem:[%s2 + $0x180] sm:$0xff]
    %v86 = vld [vmem:[%s2 + $0x188] sm:$0xff]
    %v87 = vld [vmem:[%s2 + $0x190] sm:$0xff]
    %v88 = vld [vmem:[%s2 + $0x198] sm:$0xff]
    %v89 = vld [vmem:[%s2 + $0x1a0] sm:$0xff]
    %v90 = vld [vmem:[%s2 + $0x1a8] sm:$0xff]
    %v91 = vld [vmem:[%s2 + $0x1b0] sm:$0xff]
    %v92 = vld [vmem:[%s2 + $0x1b8] sm:$0xff]
    %v93 = vld [vmem:[%s2 + $0x1c0] sm:$0xff]
    %v94 = vld [vmem:[%s2 + $0x1c8] sm:$0xff]
    %v95 = vld [vmem:[%s2 + $0x1d0] sm:$0xff]
    %v96 = vld [vmem:[%s2 + $0x1d8] sm:$0xff]
    %v97 = vld [vmem:[%s2 + $0x1e0] sm:$0xff]
    %v98 = vld [vmem:[%s2 + $0x1e8] sm:$0xff]
    %v99 = vld [vmem:[%s2 + $0x1f0] sm:$0xff]
    %v100 = vld [vmem:[%s2 + $0x1f8] sm:$0xff]
    %v101 = vld [vmem:[%s1] sm:$0xf]
    %v102 = vld [vmem:[%s3] sm:$0xff]
    %v103 = vld [vmem:[%s3 + $0x8] sm:$0xff]
    %v104 = vld [vmem:[%s3 + $0x10] sm:$0xff]
    %v105 = vld [vmem:[%s3 + $0x18] sm:$0xff]
    %v106 = vld [vmem:[%s3 + $0x20] sm:$0xff]
    %v107 = vld [vmem:[%s3 + $0x28] sm:$0xff]
    %v108 = vld [vmem:[%s3 + $0x30] sm:$0xff]
    %v109 = vld [vmem:[%s3 + $0x38] sm:$0xff]
    %v110 = vld [vmem:[%s3 + $0x40] sm:$0xff]
    %v111 = vld [vmem:[%s3 + $0x48] sm:$0xff]
    %v112 = vld [vmem:[%s3 + $0x50] sm:$0xff]
    %v113 = vld [vmem:[%s3 + $0x58] sm:$0xff]
    %v114 = vld [vmem:[%s3 + $0x60] sm:$0xff]
    %v115 = vld [vmem:[%s3 + $0x68] sm:$0xff]
    %v116 = vld [vmem:[%s3 + $0x70] sm:$0xff]
    %v117 = vld [vmem:[%s3 + $0x78] sm:$0xff]
    %v118 = vld [vmem:[%s3 + $0x80] sm:$0xff]
    %v119 = vld [vmem:[%s3 + $0x88] sm:$0xff]
    %v120 = vld [vmem:[%s3 + $0x90] sm:$0xff]
    %v121 = vld [vmem:[%s3 + $0x98] sm:$0xff]
    %v122 = vld [vmem:[%s3 + $0xa0] sm:$0xff]
    %v123 = vld [vmem:[%s3 + $0xa8] sm:$0xff]
    %v124 = vld [vmem:[%s3 + $0xb0] sm:$0xff]
    %v125 = vld [vmem:[%s3 + $0xb8] sm:$0xff]
    %v126 = vld [vmem:[%s3 + $0xc0] sm:$0xff]
    %v127 = vld [vmem:[%s3 + $0xc8] sm:$0xff]
    %v128 = vld [vmem:[%s3 + $0xd0] sm:$0xff]
    %v129 = vld [vmem:[%s3 + $0xd8] sm:$0xff]
    %v130 = vld [vmem:[%s3 + $0xe0] sm:$0xff]
    %v131 = vld [vmem:[%s3 + $0xe8] sm:$0xff]
    %v132 = vld [vmem:[%s3 + $0xf0] sm:$0xff]
    %v133 = vld [vmem:[%s3 + $0xf8] sm:$0xff]
    %v134 = vld [vmem:[%s3 + $0x100] sm:$0xff]
    %v135 = vld [vmem:[%s3 + $0x108] sm:$0xff]
    %v136 = vld [vmem:[%s3 + $0x110] sm:$0xff]
    %v137 = vld [vmem:[%s3 + $0x118] sm:$0xff]
    %v138 = vld [vmem:[%s3 + $0x120] sm:$0xff]
    %v139 = vld [vmem:[%s3 + $0x128] sm:$0xff]
    %v140 = vld [vmem:[%s3 + $0x130] sm:$0xff]
    %v141 = vld [vmem:[%s3 + $0x138] sm:$0xff]
    %v142 = vld [vmem:[%s3 + $0x140] sm:$0xff]
    %v143 = vld [vmem:[%s3 + $0x148] sm:$0xff]
    %v144 = vld [vmem:[%s3 + $0x150] sm:$0xff]
    %v145 = vld [vmem:[%s3 + $0x158] sm:$0xff]
    %v146 = vld [vmem:[%s3 + $0x160] sm:$0xff]
    %v147 = vld [vmem:[%s3 + $0x168] sm:$0xff]
    %v148 = vld [vmem:[%s3 + $0x170] sm:$0xff]
    %v149 = vld [vmem:[%s3 + $0x178] sm:$0xff]
    %v150 = vld [vmem:[%s3 + $0x180] sm:$0xff]
    %v151 = vld [vmem:[%s3 + $0x188] sm:$0xff]
    %v152 = vld [vmem:[%s3 + $0x190] sm:$0xff]
    %v153 = vld [vmem:[%s3 + $0x198] sm:$0xff]
    %v154 = vld [vmem:[%s3 + $0x1a0] sm:$0xff]
    %v155 = vld [vmem:[%s3 + $0x1a8] sm:$0xff]
    %v156 = vld [vmem:[%s3 + $0x1b0] sm:$0xff]
    %v157 = vld [vmem:[%s3 + $0x1b8] sm:$0xff]
    %v158 = vld [vmem:[%s3 + $0x1c0] sm:$0xff]
    %v159 = vld [vmem:[%s3 + $0x1c8] sm:$0xff]
    %v160 = vld [vmem:[%s3 + $0x1d0] sm:$0xff]
    %v161 = vld [vmem:[%s3 + $0x1d8] sm:$0xff]
    %v162 = vld [vmem:[%s3 + $0x1e0] sm:$0xff]
    %v163 = vld [vmem:[%s3 + $0x1e8] sm:$0xff]
    %v164 = vld [vmem:[%s3 + $0x1f0] sm:$0xff]
    %v165 = vld [vmem:[%s3 + $0x1f8] sm:$0xff]
    %v230 = vunpack.c.l.b16 %v102
    %v231 = vunpack.c.h.b16 %v102
    %v232 = vunpack.c.l.b16 %v103
    %v233 = vunpack.c.h.b16 %v103
    %v234 = vunpack.c.l.b16 %v104
    %v235 = vunpack.c.h.b16 %v104
    %v236 = vunpack.c.l.b16 %v105
    %v237 = vunpack.c.h.b16 %v105
    %v238 = vunpack.c.l.b16 %v106
    %v239 = vunpack.c.h.b16 %v106
    %v240 = vunpack.c.l.b16 %v107
    %v241 = vunpack.c.h.b16 %v107
    %v242 = vunpack.c.l.b16 %v108
    %v243 = vunpack.c.h.b16 %v108
    %v244 = vunpack.c.l.b16 %v109
    %v245 = vunpack.c.h.b16 %v109
    %v246 = vunpack.c.l.b16 %v110
    %v247 = vunpack.c.h.b16 %v110
    %v248 = vunpack.c.l.b16 %v111
    %v249 = vunpack.c.h.b16 %v111
    %v250 = vunpack.c.l.b16 %v112
    %v251 = vunpack.c.h.b16 %v112
    %v252 = vunpack.c.l.b16 %v113
    %v253 = vunpack.c.h.b16 %v113
    %v254 = vunpack.c.l.b16 %v114
    %v255 = vunpack.c.h.b16 %v114
    %v256 = vunpack.c.l.b16 %v115
    %v257 = vunpack.c.h.b16 %v115
    %v258 = vunpack.c.l.b16 %v116
    %v259 = vunpack.c.h.b16 %v116
    %v260 = vunpack.c.l.b16 %v117
    %v261 = vunpack.c.h.b16 %v117
    %v262 = vunpack.c.l.b16 %v118
    %v263 = vunpack.c.h.b16 %v118
    %v264 = vunpack.c.l.b16 %v119
    %v265 = vunpack.c.h.b16 %v119
    %v266 = vunpack.c.l.b16 %v120
    %v267 = vunpack.c.h.b16 %v120
    %v268 = vunpack.c.l.b16 %v121
    %v269 = vunpack.c.h.b16 %v121
    %v270 = vunpack.c.l.b16 %v122
    %v271 = vunpack.c.h.b16 %v122
    %v272 = vunpack.c.l.b16 %v123
    %v273 = vunpack.c.h.b16 %v123
    %v274 = vunpack.c.l.b16 %v124
    %v275 = vunpack.c.h.b16 %v124
    %v276 = vunpack.c.l.b16 %v125
    %v277 = vunpack.c.h.b16 %v125
    %v278 = vunpack.c.l.b16 %v126
    %v279 = vunpack.c.h.b16 %v126
    %v280 = vunpack.c.l.b16 %v127
    %v281 = vunpack.c.h.b16 %v127
    %v282 = vunpack.c.l.b16 %v128
    %v283 = vunpack.c.h.b16 %v128
    %v284 = vunpack.c.l.b16 %v129
    %v285 = vunpack.c.h.b16 %v129
    %v286 = vunpack.c.l.b16 %v130
    %v287 = vunpack.c.h.b16 %v130
    %v288 = vunpack.c.l.b16 %v131
    %v289 = vunpack.c.h.b16 %v131
    %v290 = vunpack.c.l.b16 %v132
    %v291 = vunpack.c.h.b16 %v132
    %v292 = vunpack.c.l.b16 %v133
    %v293 = vunpack.c.h.b16 %v133
    %v294 = vunpack.c.l.b16 %v134
    %v295 = vunpack.c.h.b16 %v134
    %v296 = vunpack.c.l.b16 %v135
    %v297 = vunpack.c.h.b16 %v135
    %v298 = vunpack.c.l.b16 %v136
    %v299 = vunpack.c.h.b16 %v136
    %v300 = vunpack.c.l.b16 %v137
    %v301 = vunpack.c.h.b16 %v137
    %v302 = vunpack.c.l.b16 %v138
    %v303 = vunpack.c.h.b16 %v138
    %v304 = vunpack.c.l.b16 %v139
    %v305 = vunpack.c.h.b16 %v139
    %v306 = vunpack.c.l.b16 %v140
    %v307 = vunpack.c.h.b16 %v140
    %v308 = vunpack.c.l.b16 %v141
    %v309 = vunpack.c.h.b16 %v141
    %v310 = vunpack.c.l.b16 %v142
    %v311 = vunpack.c.h.b16 %v142
    %v312 = vunpack.c.l.b16 %v143
    %v313 = vunpack.c.h.b16 %v143
    %v314 = vunpack.c.l.b16 %v144
    %v315 = vunpack.c.h.b16 %v144
    %v316 = vunpack.c.l.b16 %v145
    %v317 = vunpack.c.h.b16 %v145
    %v318 = vunpack.c.l.b16 %v146
    %v319 = vunpack.c.h.b16 %v146
    %v320 = vunpack.c.l.b16 %v147
    %v321 = vunpack.c.h.b16 %v147
    %v322 = vunpack.c.l.b16 %v148
    %v323 = vunpack.c.h.b16 %v148
    %v324 = vunpack.c.l.b16 %v149
    %v325 = vunpack.c.h.b16 %v149
    %v326 = vunpack.c.l.b16 %v150
    %v327 = vunpack.c.h.b16 %v150
    %v328 = vunpack.c.l.b16 %v151
    %v329 = vunpack.c.h.b16 %v151
    %v330 = vunpack.c.l.b16 %v152
    %v331 = vunpack.c.h.b16 %v152
    %v332 = vunpack.c.l.b16 %v153
    %v333 = vunpack.c.h.b16 %v153
    %v334 = vunpack.c.l.b16 %v154
    %v335 = vunpack.c.h.b16 %v154
    %v336 = vunpack.c.l.b16 %v155
    %v337 = vunpack.c.h.b16 %v155
    %v338 = vunpack.c.l.b16 %v156
    %v339 = vunpack.c.h.b16 %v156
    %v340 = vunpack.c.l.b16 %v157
    %v341 = vunpack.c.h.b16 %v157
    %v342 = vunpack.c.l.b16 %v158
    %v343 = vunpack.c.h.b16 %v158
    %v344 = vunpack.c.l.b16 %v159
    %v345 = vunpack.c.h.b16 %v159
    %v346 = vunpack.c.l.b16 %v160
    %v347 = vunpack.c.h.b16 %v160
    %v348 = vunpack.c.l.b16 %v161
    %v349 = vunpack.c.h.b16 %v161
    %v350 = vunpack.c.l.b16 %v162
    %v351 = vunpack.c.h.b16 %v162
    %v352 = vunpack.c.l.b16 %v163
    %v353 = vunpack.c.h.b16 %v163
    %v354 = vunpack.c.l.b16 %v164
    %v355 = vunpack.c.h.b16 %v164
    %v356 = vunpack.c.l.b16 %v165
    %v357 = vunpack.c.h.b16 %v165
    %v358 = vpack.c.b16 %v238, %v230
    %v359 = vpack.c.b16 %v239, %v231
    %v360 = vpack.c.b16 %v240, %v232
    %v361 = vpack.c.b16 %v241, %v233
    %v362 = vpack.c.b16 %v242, %v234
    %v363 = vpack.c.b16 %v243, %v235
    %v364 = vpack.c.b16 %v244, %v236
    %v365 = vpack.c.b16 %v245, %v237
    %v366 = vpack.c.b16 %v254, %v246
    %v367 = vpack.c.b16 %v255, %v247
    %v368 = vpack.c.b16 %v256, %v248
    %v369 = vpack.c.b16 %v257, %v249
    %v370 = vpack.c.b16 %v258, %v250
    %v371 = vpack.c.b16 %v259, %v251
    %v372 = vpack.c.b16 %v260, %v252
    %v373 = vpack.c.b16 %v261, %v253
    %v374 = vpack.c.b16 %v270, %v262
    %v375 = vpack.c.b16 %v271, %v263
    %v376 = vpack.c.b16 %v272, %v264
    %v377 = vpack.c.b16 %v273, %v265
    %v378 = vpack.c.b16 %v274, %v266
    %v379 = vpack.c.b16 %v275, %v267
    %v380 = vpack.c.b16 %v276, %v268
    %v381 = vpack.c.b16 %v277, %v269
    %v382 = vpack.c.b16 %v286, %v278
    %v383 = vpack.c.b16 %v287, %v279
    %v384 = vpack.c.b16 %v288, %v280
    %v385 = vpack.c.b16 %v289, %v281
    %v386 = vpack.c.b16 %v290, %v282
    %v387 = vpack.c.b16 %v291, %v283
    %v388 = vpack.c.b16 %v292, %v284
    %v389 = vpack.c.b16 %v293, %v285
    %v390 = vpack.c.b16 %v302, %v294
    %v391 = vpack.c.b16 %v303, %v295
    %v392 = vpack.c.b16 %v304, %v296
    %v393 = vpack.c.b16 %v305, %v297
    %v394 = vpack.c.b16 %v306, %v298
    %v395 = vpack.c.b16 %v307, %v299
    %v396 = vpack.c.b16 %v308, %v300
    %v397 = vpack.c.b16 %v309, %v301
    %v398 = vpack.c.b16 %v318, %v310
    %v399 = vpack.c.b16 %v319, %v311
    %v400 = vpack.c.b16 %v320, %v312
    %v401 = vpack.c.b16 %v321, %v313
    %v402 = vpack.c.b16 %v322, %v314
    %v403 = vpack.c.b16 %v323, %v315
    %v404 = vpack.c.b16 %v324, %v316
    %v405 = vpack.c.b16 %v325, %v317
    %v406 = vpack.c.b16 %v334, %v326
    %v407 = vpack.c.b16 %v335, %v327
    %v408 = vpack.c.b16 %v336, %v328
    %v409 = vpack.c.b16 %v337, %v329
    %v410 = vpack.c.b16 %v338, %v330
    %v411 = vpack.c.b16 %v339, %v331
    %v412 = vpack.c.b16 %v340, %v332
    %v413 = vpack.c.b16 %v341, %v333
    %v414 = vpack.c.b16 %v350, %v342
    %v415 = vpack.c.b16 %v351, %v343
    %v416 = vpack.c.b16 %v352, %v344
    %v417 = vpack.c.b16 %v353, %v345
    %v418 = vpack.c.b16 %v354, %v346
    %v419 = vpack.c.b16 %v355, %v347
    %v420 = vpack.c.b16 %v356, %v348
    %v421 = vpack.c.b16 %v357, %v349
    %486 = vmatprep.subr.bf16.mxu0 %v359
    %487 = vmatpush1.bf16.msra.mxu0 %v358
    %488 = vmatprep.subr.bf16.mxu0 %v367
    %489 = vmatpush1.bf16.msra.mxu0 %v366
    %490 = vmatprep.subr.bf16.mxu0 %v375
    %491 = vmatpush1.bf16.msra.mxu0 %v374
    %492 = vmatprep.subr.bf16.mxu0 %v383
    %493 = vmatpush1.bf16.msra.mxu0 %v382
    %494 = vmatprep.subr.bf16.mxu0 %v391
    %495 = vmatpush1.bf16.msra.mxu0 %v390
    %496 = vmatprep.subr.bf16.mxu0 %v399
    %497 = vmatpush1.bf16.msra.mxu0 %v398
    %498 = vmatprep.subr.bf16.mxu0 %v407
    %499 = vmatpush1.bf16.msra.mxu0 %v406
    %500 = vmatprep.subr.bf16.mxu0 %v415
    %501 = vmatpush1.bf16.msra.mxu0 %v414
    %502 = vmatprep.subr.bf16.mxu0 0
    %503 = vmatpush1.bf16.msra.mxu0 0
    %504 = vmatprep.subr.bf16.mxu0 0
    %505 = vmatpush1.bf16.msra.mxu0 0
    %506 = vmatprep.subr.bf16.mxu0 0
    %507 = vmatpush1.bf16.msra.mxu0 0
    %508 = vmatprep.subr.bf16.mxu0 0
    %509 = vmatpush1.bf16.msra.mxu0 0
    %510 = vmatprep.subr.bf16.mxu0 0
    %511 = vmatpush1.bf16.msra.mxu0 0
    %512 = vmatprep.subr.bf16.mxu0 0
    %513 = vmatpush1.bf16.msra.mxu0 0
    %514 = vmatprep.subr.bf16.mxu0 0
    %515 = vmatpush1.bf16.msra.mxu0 0
    %516 = vmatprep.subr.bf16.mxu0 0
    %517 = vmatpush1.bf16.msra.mxu0 0
    %518 = vmatprep.mubr.bf16.mxu0 0
    %519 = vmatmul.mubr.bf16.gmra.mrb[0].mxu0 %v101
    %v520 = vpop.f32.mrb[0].mxu0
    %v521 = vadd.f32 0.0, %v520
    %v522 = vpop.f32.mrb[0].mxu0
    %v523 = vadd.f32 0.0, %v522
    %v524 = vpop.f32.mrb[0].mxu0
    %v525 = vpop.f32.mrb[0].mxu0
    %526 = vdwg.mxu0
    %527 = vmatprep.subr.bf16.mxu0 %v361
    %528 = vmatpush1.bf16.msra.mxu0 %v360
    %529 = vmatprep.subr.bf16.mxu0 %v369
    %530 = vmatpush1.bf16.msra.mxu0 %v368
    %531 = vmatprep.subr.bf16.mxu0 %v377
    %532 = vmatpush1.bf16.msra.mxu0 %v376
    %533 = vmatprep.subr.bf16.mxu0 %v385
    %534 = vmatpush1.bf16.msra.mxu0 %v384
    %535 = vmatprep.subr.bf16.mxu0 %v393
    %536 = vmatpush1.bf16.msra.mxu0 %v392
    %537 = vmatprep.subr.bf16.mxu0 %v401
    %538 = vmatpush1.bf16.msra.mxu0 %v400
    %539 = vmatprep.subr.bf16.mxu0 %v409
    %540 = vmatpush1.bf16.msra.mxu0 %v408
    %541 = vmatprep.subr.bf16.mxu0 %v417
    %542 = vmatpush1.bf16.msra.mxu0 %v416
    %543 = vmatprep.subr.bf16.mxu0 0
    %544 = vmatpush1.bf16.msra.mxu0 0
    %545 = vmatprep.subr.bf16.mxu0 0
    %546 = vmatpush1.bf16.msra.mxu0 0
    %547 = vmatprep.subr.bf16.mxu0 0
    %548 = vmatpush1.bf16.msra.mxu0 0
    %549 = vmatprep.subr.bf16.mxu0 0
    %550 = vmatpush1.bf16.msra.mxu0 0
    %551 = vmatprep.subr.bf16.mxu0 0
    %552 = vmatpush1.bf16.msra.mxu0 0
    %553 = vmatprep.subr.bf16.mxu0 0
    %554 = vmatpush1.bf16.msra.mxu0 0
    %555 = vmatprep.subr.bf16.mxu0 0
    %556 = vmatpush1.bf16.msra.mxu0 0
    %557 = vmatprep.subr.bf16.mxu0 0
    %558 = vmatpush1.bf16.msra.mxu0 0
    %559 = vmatprep.mubr.bf16.mxu0 0
    %560 = vmatmul.mubr.bf16.gmra.mrb[0].mxu0 %v101
    %v561 = vpop.f32.mrb[0].mxu0
    %v562 = vadd.f32 0.0, %v561
    %v563 = vpop.f32.mrb[0].mxu0
    %v564 = vadd.f32 0.0, %v563
    %v565 = vpop.f32.mrb[0].mxu0
    %v566 = vpop.f32.mrb[0].mxu0
    %567 = vdwg.mxu0
    %568 = vmatprep.subr.bf16.mxu0 %v363
    %569 = vmatpush1.bf16.msra.mxu0 %v362
    %570 = vmatprep.subr.bf16.mxu0 %v371
    %571 = vmatpush1.bf16.msra.mxu0 %v370
    %572 = vmatprep.subr.bf16.mxu0 %v379
    %573 = vmatpush1.bf16.msra.mxu0 %v378
    %574 = vmatprep.subr.bf16.mxu0 %v387
    %575 = vmatpush1.bf16.msra.mxu0 %v386
    %576 = vmatprep.subr.bf16.mxu0 %v395
    %577 = vmatpush1.bf16.msra.mxu0 %v394
    %578 = vmatprep.subr.bf16.mxu0 %v403
    %579 = vmatpush1.bf16.msra.mxu0 %v402
    %580 = vmatprep.subr.bf16.mxu0 %v411
    %581 = vmatpush1.bf16.msra.mxu0 %v410
    %582 = vmatprep.subr.bf16.mxu0 %v419
    %583 = vmatpush1.bf16.msra.mxu0 %v418
    %584 = vmatprep.subr.bf16.mxu0 0
    %585 = vmatpush1.bf16.msra.mxu0 0
    %586 = vmatprep.subr.bf16.mxu0 0
    %587 = vmatpush1.bf16.msra.mxu0 0
    %588 = vmatprep.subr.bf16.mxu0 0
    %589 = vmatpush1.bf16.msra.mxu0 0
    %590 = vmatprep.subr.bf16.mxu0 0
    %591 = vmatpush1.bf16.msra.mxu0 0
    %592 = vmatprep.subr.bf16.mxu0 0
    %593 = vmatpush1.bf16.msra.mxu0 0
    %594 = vmatprep.subr.bf16.mxu0 0
    %595 = vmatpush1.bf16.msra.mxu0 0
    %596 = vmatprep.subr.bf16.mxu0 0
    %597 = vmatpush1.bf16.msra.mxu0 0
    %598 = vmatprep.subr.bf16.mxu0 0
    %599 = vmatpush1.bf16.msra.mxu0 0
    %600 = vmatprep.mubr.bf16.mxu0 0
    %601 = vmatmul.mubr.bf16.gmra.mrb[0].mxu0 %v101
    %v602 = vpop.f32.mrb[0].mxu0
    %v603 = vadd.f32 0.0, %v602
    %v604 = vpop.f32.mrb[0].mxu0
    %v605 = vadd.f32 0.0, %v604
    %v606 = vpop.f32.mrb[0].mxu0
    %v607 = vpop.f32.mrb[0].mxu0
    %608 = vdwg.mxu0
    %609 = vmatprep.subr.bf16.mxu0 %v365
    %610 = vmatpush1.bf16.msra.mxu0 %v364
    %611 = vmatprep.subr.bf16.mxu0 %v373
    %612 = vmatpush1.bf16.msra.mxu0 %v372
    %613 = vmatprep.subr.bf16.mxu0 %v381
    %614 = vmatpush1.bf16.msra.mxu0 %v380
    %615 = vmatprep.subr.bf16.mxu0 %v389
    %616 = vmatpush1.bf16.msra.mxu0 %v388
    %617 = vmatprep.subr.bf16.mxu0 %v397
    %618 = vmatpush1.bf16.msra.mxu0 %v396
    %619 = vmatprep.subr.bf16.mxu0 %v405
    %620 = vmatpush1.bf16.msra.mxu0 %v404
    %621 = vmatprep.subr.bf16.mxu0 %v413
    %622 = vmatpush1.bf16.msra.mxu0 %v412
    %623 = vmatprep.subr.bf16.mxu0 %v421
    %624 = vmatpush1.bf16.msra.mxu0 %v420
    %625 = vmatprep.subr.bf16.mxu0 0
    %626 = vmatpush1.bf16.msra.mxu0 0
    %627 = vmatprep.subr.bf16.mxu0 0
    %628 = vmatpush1.bf16.msra.mxu0 0
    %629 = vmatprep.subr.bf16.mxu0 0
    %630 = vmatpush1.bf16.msra.mxu0 0
    %631 = vmatprep.subr.bf16.mxu0 0
    %632 = vmatpush1.bf16.msra.mxu0 0
    %633 = vmatprep.subr.bf16.mxu0 0
    %634 = vmatpush1.bf16.msra.mxu0 0
    %635 = vmatprep.subr.bf16.mxu0 0
    %636 = vmatpush1.bf16.msra.mxu0 0
    %637 = vmatprep.subr.bf16.mxu0 0
    %638 = vmatpush1.bf16.msra.mxu0 0
    %639 = vmatprep.subr.bf16.mxu0 0
    %640 = vmatpush1.bf16.msra.mxu0 0
    %641 = vmatprep.mubr.bf16.mxu0 0
    %642 = vmatmul.mubr.bf16.gmra.mrb[0].mxu0 %v101
    %v643 = vpop.f32.mrb[0].mxu0
    %v644 = vadd.f32 0.0, %v643
    %v645 = vpop.f32.mrb[0].mxu0
    %v646 = vadd.f32 0.0, %v645
    %v647 = vpop.f32.mrb[0].mxu0
    %v648 = vpop.f32.mrb[0].mxu0
    %649 = vdwg.mxu0
    %v714 = vunpack.c.l.b16 %v37
    %v715 = vunpack.c.h.b16 %v37
    %v716 = vunpack.c.l.b16 %v38
    %v717 = vunpack.c.h.b16 %v38
    %v718 = vunpack.c.l.b16 %v39
    %v719 = vunpack.c.h.b16 %v39
    %v720 = vunpack.c.l.b16 %v40
    %v721 = vunpack.c.h.b16 %v40
    %v722 = vunpack.c.l.b16 %v41
    %v723 = vunpack.c.h.b16 %v41
    %v724 = vunpack.c.l.b16 %v42
    %v725 = vunpack.c.h.b16 %v42
    %v726 = vunpack.c.l.b16 %v43
    %v727 = vunpack.c.h.b16 %v43
    %v728 = vunpack.c.l.b16 %v44
    %v729 = vunpack.c.h.b16 %v44
    %v730 = vunpack.c.l.b16 %v45
    %v731 = vunpack.c.h.b16 %v45
    %v732 = vunpack.c.l.b16 %v46
    %v733 = vunpack.c.h.b16 %v46
    %v734 = vunpack.c.l.b16 %v47
    %v735 = vunpack.c.h.b16 %v47
    %v736 = vunpack.c.l.b16 %v48
    %v737 = vunpack.c.h.b16 %v48
    %v738 = vunpack.c.l.b16 %v49
    %v739 = vunpack.c.h.b16 %v49
    %v740 = vunpack.c.l.b16 %v50
    %v741 = vunpack.c.h.b16 %v50
    %v742 = vunpack.c.l.b16 %v51
    %v743 = vunpack.c.h.b16 %v51
    %v744 = vunpack.c.l.b16 %v52
    %v745 = vunpack.c.h.b16 %v52
    %v746 = vunpack.c.l.b16 %v53
    %v747 = vunpack.c.h.b16 %v53
    %v748 = vunpack.c.l.b16 %v54
    %v749 = vunpack.c.h.b16 %v54
    %v750 = vunpack.c.l.b16 %v55
    %v751 = vunpack.c.h.b16 %v55
    %v752 = vunpack.c.l.b16 %v56
    %v753 = vunpack.c.h.b16 %v56
    %v754 = vunpack.c.l.b16 %v57
    %v755 = vunpack.c.h.b16 %v57
    %v756 = vunpack.c.l.b16 %v58
    %v757 = vunpack.c.h.b16 %v58
    %v758 = vunpack.c.l.b16 %v59
    %v759 = vunpack.c.h.b16 %v59
    %v760 = vunpack.c.l.b16 %v60
    %v761 = vunpack.c.h.b16 %v60
    %v762 = vunpack.c.l.b16 %v61
    %v763 = vunpack.c.h.b16 %v61
    %v764 = vunpack.c.l.b16 %v62
    %v765 = vunpack.c.h.b16 %v62
    %v766 = vunpack.c.l.b16 %v63
    %v767 = vunpack.c.h.b16 %v63
    %v768 = vunpack.c.l.b16 %v64
    %v769 = vunpack.c.h.b16 %v64
    %v770 = vunpack.c.l.b16 %v65
    %v771 = vunpack.c.h.b16 %v65
    %v772 = vunpack.c.l.b16 %v66
    %v773 = vunpack.c.h.b16 %v66
    %v774 = vunpack.c.l.b16 %v67
    %v775 = vunpack.c.h.b16 %v67
    %v776 = vunpack.c.l.b16 %v68
    %v777 = vunpack.c.h.b16 %v68
    %v778 = vunpack.c.l.b16 %v69
    %v779 = vunpack.c.h.b16 %v69
    %v780 = vunpack.c.l.b16 %v70
    %v781 = vunpack.c.h.b16 %v70
    %v782 = vunpack.c.l.b16 %v71
    %v783 = vunpack.c.h.b16 %v71
    %v784 = vunpack.c.l.b16 %v72
    %v785 = vunpack.c.h.b16 %v72
    %v786 = vunpack.c.l.b16 %v73
    %v787 = vunpack.c.h.b16 %v73
    %v788 = vunpack.c.l.b16 %v74
    %v789 = vunpack.c.h.b16 %v74
    %v790 = vunpack.c.l.b16 %v75
    %v791 = vunpack.c.h.b16 %v75
    %v792 = vunpack.c.l.b16 %v76
    %v793 = vunpack.c.h.b16 %v76
    %v794 = vunpack.c.l.b16 %v77
    %v795 = vunpack.c.h.b16 %v77
    %v796 = vunpack.c.l.b16 %v78
    %v797 = vunpack.c.h.b16 %v78
    %v798 = vunpack.c.l.b16 %v79
    %v799 = vunpack.c.h.b16 %v79
    %v800 = vunpack.c.l.b16 %v80
    %v801 = vunpack.c.h.b16 %v80
    %v802 = vunpack.c.l.b16 %v81
    %v803 = vunpack.c.h.b16 %v81
    %v804 = vunpack.c.l.b16 %v82
    %v805 = vunpack.c.h.b16 %v82
    %v806 = vunpack.c.l.b16 %v83
    %v807 = vunpack.c.h.b16 %v83
    %v808 = vunpack.c.l.b16 %v84
    %v809 = vunpack.c.h.b16 %v84
    %v810 = vunpack.c.l.b16 %v85
    %v811 = vunpack.c.h.b16 %v85
    %v812 = vunpack.c.l.b16 %v86
    %v813 = vunpack.c.h.b16 %v86
    %v814 = vunpack.c.l.b16 %v87
    %v815 = vunpack.c.h.b16 %v87
    %v816 = vunpack.c.l.b16 %v88
    %v817 = vunpack.c.h.b16 %v88
    %v818 = vunpack.c.l.b16 %v89
    %v819 = vunpack.c.h.b16 %v89
    %v820 = vunpack.c.l.b16 %v90
    %v821 = vunpack.c.h.b16 %v90
    %v822 = vunpack.c.l.b16 %v91
    %v823 = vunpack.c.h.b16 %v91
    %v824 = vunpack.c.l.b16 %v92
    %v825 = vunpack.c.h.b16 %v92
    %v826 = vunpack.c.l.b16 %v93
    %v827 = vunpack.c.h.b16 %v93
    %v828 = vunpack.c.l.b16 %v94
    %v829 = vunpack.c.h.b16 %v94
    %v830 = vunpack.c.l.b16 %v95
    %v831 = vunpack.c.h.b16 %v95
    %v832 = vunpack.c.l.b16 %v96
    %v833 = vunpack.c.h.b16 %v96
    %v834 = vunpack.c.l.b16 %v97
    %v835 = vunpack.c.h.b16 %v97
    %v836 = vunpack.c.l.b16 %v98
    %v837 = vunpack.c.h.b16 %v98
    %v838 = vunpack.c.l.b16 %v99
    %v839 = vunpack.c.h.b16 %v99
    %v840 = vunpack.c.l.b16 %v100
    %v841 = vunpack.c.h.b16 %v100
    %v842 = vpack.c.b16 %v722, %v714
    %v843 = vpack.c.b16 %v723, %v715
    %v844 = vpack.c.b16 %v724, %v716
    %v845 = vpack.c.b16 %v725, %v717
    %v846 = vpack.c.b16 %v726, %v718
    %v847 = vpack.c.b16 %v727, %v719
    %v848 = vpack.c.b16 %v728, %v720
    %v849 = vpack.c.b16 %v729, %v721
    %v850 = vpack.c.b16 %v738, %v730
    %v851 = vpack.c.b16 %v739, %v731
    %v852 = vpack.c.b16 %v740, %v732
    %v853 = vpack.c.b16 %v741, %v733
    %v854 = vpack.c.b16 %v742, %v734
    %v855 = vpack.c.b16 %v743, %v735
    %v856 = vpack.c.b16 %v744, %v736
    %v857 = vpack.c.b16 %v745, %v737
    %v858 = vpack.c.b16 %v754, %v746
    %v859 = vpack.c.b16 %v755, %v747
    %v860 = vpack.c.b16 %v756, %v748
    %v861 = vpack.c.b16 %v757, %v749
    %v862 = vpack.c.b16 %v758, %v750
    %v863 = vpack.c.b16 %v759, %v751
    %v864 = vpack.c.b16 %v760, %v752
    %v865 = vpack.c.b16 %v761, %v753
    %v866 = vpack.c.b16 %v770, %v762
    %v867 = vpack.c.b16 %v771, %v763
    %v868 = vpack.c.b16 %v772, %v764
    %v869 = vpack.c.b16 %v773, %v765
    %v870 = vpack.c.b16 %v774, %v766
    %v871 = vpack.c.b16 %v775, %v767
    %v872 = vpack.c.b16 %v776, %v768
    %v873 = vpack.c.b16 %v777, %v769
    %v874 = vpack.c.b16 %v786, %v778
    %v875 = vpack.c.b16 %v787, %v779
    %v876 = vpack.c.b16 %v788, %v780
    %v877 = vpack.c.b16 %v789, %v781
    %v878 = vpack.c.b16 %v790, %v782
    %v879 = vpack.c.b16 %v791, %v783
    %v880 = vpack.c.b16 %v792, %v784
    %v881 = vpack.c.b16 %v793, %v785
    %v882 = vpack.c.b16 %v802, %v794
    %v883 = vpack.c.b16 %v803, %v795
    %v884 = vpack.c.b16 %v804, %v796
    %v885 = vpack.c.b16 %v805, %v797
    %v886 = vpack.c.b16 %v806, %v798
    %v887 = vpack.c.b16 %v807, %v799
    %v888 = vpack.c.b16 %v808, %v800
    %v889 = vpack.c.b16 %v809, %v801
    %v890 = vpack.c.b16 %v818, %v810
    %v891 = vpack.c.b16 %v819, %v811
    %v892 = vpack.c.b16 %v820, %v812
    %v893 = vpack.c.b16 %v821, %v813
    %v894 = vpack.c.b16 %v822, %v814
    %v895 = vpack.c.b16 %v823, %v815
    %v896 = vpack.c.b16 %v824, %v816
    %v897 = vpack.c.b16 %v825, %v817
    %v898 = vpack.c.b16 %v834, %v826
    %v899 = vpack.c.b16 %v835, %v827
    %v900 = vpack.c.b16 %v836, %v828
    %v901 = vpack.c.b16 %v837, %v829
    %v902 = vpack.c.b16 %v838, %v830
    %v903 = vpack.c.b16 %v839, %v831
    %v904 = vpack.c.b16 %v840, %v832
    %v905 = vpack.c.b16 %v841, %v833
    %970 = vmatprep.subr.bf16.mxu0 %v843
    %971 = vmatpush1.bf16.msra.mxu0 %v842
    %972 = vmatprep.subr.bf16.mxu0 %v851
    %973 = vmatpush1.bf16.msra.mxu0 %v850
    %974 = vmatprep.subr.bf16.mxu0 %v859
    %975 = vmatpush1.bf16.msra.mxu0 %v858
    %976 = vmatprep.subr.bf16.mxu0 %v867
    %977 = vmatpush1.bf16.msra.mxu0 %v866
    %978 = vmatprep.subr.bf16.mxu0 %v875
    %979 = vmatpush1.bf16.msra.mxu0 %v874
    %980 = vmatprep.subr.bf16.mxu0 %v883
    %981 = vmatpush1.bf16.msra.mxu0 %v882
    %982 = vmatprep.subr.bf16.mxu0 %v891
    %983 = vmatpush1.bf16.msra.mxu0 %v890
    %984 = vmatprep.subr.bf16.mxu0 %v899
    %985 = vmatpush1.bf16.msra.mxu0 %v898
    %986 = vmatprep.subr.bf16.mxu0 0
    %987 = vmatpush1.bf16.msra.mxu0 0
    %988 = vmatprep.subr.bf16.mxu0 0
    %989 = vmatpush1.bf16.msra.mxu0 0
    %990 = vmatprep.subr.bf16.mxu0 0
    %991 = vmatpush1.bf16.msra.mxu0 0
    %992 = vmatprep.subr.bf16.mxu0 0
    %993 = vmatpush1.bf16.msra.mxu0 0
    %994 = vmatprep.subr.bf16.mxu0 0
    %995 = vmatpush1.bf16.msra.mxu0 0
    %996 = vmatprep.subr.bf16.mxu0 0
    %997 = vmatpush1.bf16.msra.mxu0 0
    %998 = vmatprep.subr.bf16.mxu0 0
    %999 = vmatpush1.bf16.msra.mxu0 0
    %1000 = vmatprep.subr.bf16.mxu0 0
    %1001 = vmatpush1.bf16.msra.mxu0 0
    %1002 = vmatprep.mubr.bf16.mxu0 0
    %1003 = vmatmul.mubr.bf16.gmra.mrb[0].mxu0 %v36
    %v1004 = vpop.f32.mrb[0].mxu0
    %v1005 = vadd.f32 %v521, %v1004
    %v1006 = vpop.f32.mrb[0].mxu0
    %v1007 = vadd.f32 %v523, %v1006
    %v1008 = vpop.f32.mrb[0].mxu0
    %v1009 = vpop.f32.mrb[0].mxu0
    %1010 = vdwg.mxu0
    %1011 = vmatprep.subr.bf16.mxu0 %v845
    %1012 = vmatpush1.bf16.msra.mxu0 %v844
    %1013 = vmatprep.subr.bf16.mxu0 %v853
    %1014 = vmatpush1.bf16.msra.mxu0 %v852
    %1015 = vmatprep.subr.bf16.mxu0 %v861
    %1016 = vmatpush1.bf16.msra.mxu0 %v860
    %1017 = vmatprep.subr.bf16.mxu0 %v869
    %1018 = vmatpush1.bf16.msra.mxu0 %v868
    %1019 = vmatprep.subr.bf16.mxu0 %v877
    %1020 = vmatpush1.bf16.msra.mxu0 %v876
    %1021 = vmatprep.subr.bf16.mxu0 %v885
    %1022 = vmatpush1.bf16.msra.mxu0 %v884
    %1023 = vmatprep.subr.bf16.mxu0 %v893
    %1024 = vmatpush1.bf16.msra.mxu0 %v892
    %1025 = vmatprep.subr.bf16.mxu0 %v901
    %1026 = vmatpush1.bf16.msra.mxu0 %v900
    %1027 = vmatprep.subr.bf16.mxu0 0
    %1028 = vmatpush1.bf16.msra.mxu0 0
    %1029 = vmatprep.subr.bf16.mxu0 0
    %1030 = vmatpush1.bf16.msra.mxu0 0
    %1031 = vmatprep.subr.bf16.mxu0 0
    %1032 = vmatpush1.bf16.msra.mxu0 0
    %1033 = vmatprep.subr.bf16.mxu0 0
    %1034 = vmatpush1.bf16.msra.mxu0 0
    %1035 = vmatprep.subr.bf16.mxu0 0
    %1036 = vmatpush1.bf16.msra.mxu0 0
    %1037 = vmatprep.subr.bf16.mxu0 0
    %1038 = vmatpush1.bf16.msra.mxu0 0
    %1039 = vmatprep.subr.bf16.mxu0 0
    %1040 = vmatpush1.bf16.msra.mxu0 0
    %1041 = vmatprep.subr.bf16.mxu0 0
    %1042 = vmatpush1.bf16.msra.mxu0 0
    %1043 = vmatprep.mubr.bf16.mxu0 0
    %1044 = vmatmul.mubr.bf16.gmra.mrb[0].mxu0 %v36
    %v1045 = vpop.f32.mrb[0].mxu0
    %v1046 = vadd.f32 %v562, %v1045
    %v1047 = vpop.f32.mrb[0].mxu0
    %v1048 = vadd.f32 %v564, %v1047
    %v1049 = vpop.f32.mrb[0].mxu0
    %v1050 = vpop.f32.mrb[0].mxu0
    %1051 = vdwg.mxu0
    %1052 = vmatprep.subr.bf16.mxu0 %v847
    %1053 = vmatpush1.bf16.msra.mxu0 %v846
    %1054 = vmatprep.subr.bf16.mxu0 %v855
    %1055 = vmatpush1.bf16.msra.mxu0 %v854
    %1056 = vmatprep.subr.bf16.mxu0 %v863
    %1057 = vmatpush1.bf16.msra.mxu0 %v862
    %1058 = vmatprep.subr.bf16.mxu0 %v871
    %1059 = vmatpush1.bf16.msra.mxu0 %v870
    %1060 = vmatprep.subr.bf16.mxu0 %v879
    %1061 = vmatpush1.bf16.msra.mxu0 %v878
    %1062 = vmatprep.subr.bf16.mxu0 %v887
    %1063 = vmatpush1.bf16.msra.mxu0 %v886
    %1064 = vmatprep.subr.bf16.mxu0 %v895
    %1065 = vmatpush1.bf16.msra.mxu0 %v894
    %1066 = vmatprep.subr.bf16.mxu0 %v903
    %1067 = vmatpush1.bf16.msra.mxu0 %v902
    %1068 = vmatprep.subr.bf16.mxu0 0
    %1069 = vmatpush1.bf16.msra.mxu0 0
    %1070 = vmatprep.subr.bf16.mxu0 0
    %1071 = vmatpush1.bf16.msra.mxu0 0
    %1072 = vmatprep.subr.bf16.mxu0 0
    %1073 = vmatpush1.bf16.msra.mxu0 0
    %1074 = vmatprep.subr.bf16.mxu0 0
    %1075 = vmatpush1.bf16.msra.mxu0 0
    %1076 = vmatprep.subr.bf16.mxu0 0
    %1077 = vmatpush1.bf16.msra.mxu0 0
    %1078 = vmatprep.subr.bf16.mxu0 0
    %1079 = vmatpush1.bf16.msra.mxu0 0
    %1080 = vmatprep.subr.bf16.mxu0 0
    %1081 = vmatpush1.bf16.msra.mxu0 0
    %1082 = vmatprep.subr.bf16.mxu0 0
    %1083 = vmatpush1.bf16.msra.mxu0 0
    %1084 = vmatprep.mubr.bf16.mxu0 0
    %1085 = vmatmul.mubr.bf16.gmra.mrb[0].mxu0 %v36
    %v1086 = vpop.f32.mrb[0].mxu0
    %v1087 = vadd.f32 %v603, %v1086
    %v1088 = vpop.f32.mrb[0].mxu0
    %v1089 = vadd.f32 %v605, %v1088
    %v1090 = vpop.f32.mrb[0].mxu0
    %v1091 = vpop.f32.mrb[0].mxu0
    %1092 = vdwg.mxu0
    %1093 = vmatprep.subr.bf16.mxu0 %v849
    %1094 = vmatpush1.bf16.msra.mxu0 %v848
    %1095 = vmatprep.subr.bf16.mxu0 %v857
    %1096 = vmatpush1.bf16.msra.mxu0 %v856
    %1097 = vmatprep.subr.bf16.mxu0 %v865
    %1098 = vmatpush1.bf16.msra.mxu0 %v864
    %1099 = vmatprep.subr.bf16.mxu0 %v873
    %1100 = vmatpush1.bf16.msra.mxu0 %v872
    %1101 = vmatprep.subr.bf16.mxu0 %v881
    %1102 = vmatpush1.bf16.msra.mxu0 %v880
    %1103 = vmatprep.subr.bf16.mxu0 %v889
    %1104 = vmatpush1.bf16.msra.mxu0 %v888
    %1105 = vmatprep.subr.bf16.mxu0 %v897
    %1106 = vmatpush1.bf16.msra.mxu0 %v896
    %1107 = vmatprep.subr.bf16.mxu0 %v905
    %1108 = vmatpush1.bf16.msra.mxu0 %v904
    %1109 = vmatprep.subr.bf16.mxu0 0
    %1110 = vmatpush1.bf16.msra.mxu0 0
    %1111 = vmatprep.subr.bf16.mxu0 0
    %1112 = vmatpush1.bf16.msra.mxu0 0
    %1113 = vmatprep.subr.bf16.mxu0 0
    %1114 = vmatpush1.bf16.msra.mxu0 0
    %1115 = vmatprep.subr.bf16.mxu0 0
    %1116 = vmatpush1.bf16.msra.mxu0 0
    %1117 = vmatprep.subr.bf16.mxu0 0
    %1118 = vmatpush1.bf16.msra.mxu0 0
    %1119 = vmatprep.subr.bf16.mxu0 0
    %1120 = vmatpush1.bf16.msra.mxu0 0
    %1121 = vmatprep.subr.bf16.mxu0 0
    %1122 = vmatpush1.bf16.msra.mxu0 0
    %1123 = vmatprep.subr.bf16.mxu0 0
    %1124 = vmatpush1.bf16.msra.mxu0 0
    %1125 = vmatprep.mubr.bf16.mxu0 0
    %1126 = vmatmul.mubr.bf16.gmra.mrb[0].mxu0 %v36
    %v1127 = vpop.f32.mrb[0].mxu0
    %v1128 = vadd.f32 %v644, %v1127
    %v1129 = vpop.f32.mrb[0].mxu0
    %v1130 = vadd.f32 %v646, %v1129
    %v1131 = vpop.f32.mrb[0].mxu0
    %v1132 = vpop.f32.mrb[0].mxu0
    %1133 = vdwg.mxu0
    %v1134 = vld [vmem:[%s4] sm:$0xff]
    %v1136 = vlaneseq
    %v1137 = vshrl.u32 %v1136, 7
    %v1138 = vsub.s32 0, %v1137
    %v1139 = vrot.slane %v1134, %v1138
    %v1140 = vlaneseq
    %v1141 = vshrl.u32 %v1140, 7
    %v1142 = vsub.s32 1, %v1141
    %v1143 = vrot.slane %v1134, %v1142
    %v1144 = vlaneseq
    %v1145 = vshrl.u32 %v1144, 7
    %v1146 = vsub.s32 2, %v1145
    %v1147 = vrot.slane %v1134, %v1146
    %v1148 = vlaneseq
    %v1149 = vshrl.u32 %v1148, 7
    %v1150 = vsub.s32 3, %v1149
    %v1151 = vrot.slane %v1134, %v1150
    %v1152 = vlaneseq
    %v1153 = vshrl.u32 %v1152, 7
    %v1154 = vsub.s32 4, %v1153
    %v1155 = vrot.slane %v1134, %v1154
    %v1156 = vlaneseq
    %v1157 = vshrl.u32 %v1156, 7
    %v1158 = vsub.s32 5, %v1157
    %v1159 = vrot.slane %v1134, %v1158
    %v1160 = vlaneseq
    %v1161 = vshrl.u32 %v1160, 7
    %v1162 = vsub.s32 6, %v1161
    %v1163 = vrot.slane %v1134, %v1162
    %v1164 = vlaneseq
    %v1165 = vshrl.u32 %v1164, 7
    %v1166 = vsub.s32 7, %v1165
    %v1167 = vrot.slane %v1134, %v1166
    %v1176 = vadd.f32 %v1005, %v1139
    %v1177 = vadd.f32 %v1007, %v1143
    %v1178 = vadd.f32 %v1046, %v1147
    %v1179 = vadd.f32 %v1048, %v1151
    %v1180 = vadd.f32 %v1087, %v1155
    %v1181 = vadd.f32 %v1089, %v1159
    %v1182 = vadd.f32 %v1128, %v1163
    %v1183 = vadd.f32 %v1130, %v1167
    %v1184 = vmul.f32 %v1176, 0.5
    %v1185 = vmul.f32 %v1177, 0.5
    %v1186 = vmul.f32 %v1178, 0.5
    %v1187 = vmul.f32 %v1179, 0.5
    %v1188 = vmul.f32 %v1180, 0.5
    %v1189 = vmul.f32 %v1181, 0.5
    %v1190 = vmul.f32 %v1182, 0.5
    %v1191 = vmul.f32 %v1183, 0.5
    %v1192 = vrcp.pop 1.4142135
    %v1193 = vmul.f32 %v1176, %v1192
    %v1194 = vmul.f32 %v1177, %v1192
    %v1195 = vmul.f32 %v1178, %v1192
    %v1196 = vmul.f32 %v1179, %v1192
    %v1197 = vmul.f32 %v1180, %v1192
    %v1198 = vmul.f32 %v1181, %v1192
    %v1199 = vmul.f32 %v1182, %v1192
    %v1200 = vmul.f32 %v1183, %v1192
    %v1201 = verf.f32.pop %v1193
    %v1202 = verf.f32.pop %v1194
    %v1203 = verf.f32.pop %v1195
    %v1204 = verf.f32.pop %v1196
    %v1205 = verf.f32.pop %v1197
    %v1206 = verf.f32.pop %v1198
    %v1207 = verf.f32.pop %v1199
    %v1208 = verf.f32.pop %v1200
    %v1209 = vadd.f32 %v1201, 1.0
    %v1210 = vadd.f32 %v1202, 1.0
    %v1211 = vadd.f32 %v1203, 1.0
    %v1212 = vadd.f32 %v1204, 1.0
    %v1213 = vadd.f32 %v1205, 1.0
    %v1214 = vadd.f32 %v1206, 1.0
    %v1215 = vadd.f32 %v1207, 1.0
    %v1216 = vadd.f32 %v1208, 1.0
    %v1217 = vmul.f32 %v1184, %v1209
    %v1218 = vmul.f32 %v1185, %v1210
    %v1219 = vmul.f32 %v1186, %v1211
    %v1220 = vmul.f32 %v1187, %v1212
    %v1221 = vmul.f32 %v1188, %v1213
    %v1222 = vmul.f32 %v1189, %v1214
    %v1223 = vmul.f32 %v1190, %v1215
    %v1224 = vmul.f32 %v1191, %v1216
    %v1225 = vpack.c.bf16 %v1217, %v1217
    %v1226 = vpack.c.bf16 %v1218, %v1218
    %v1227 = vpack.c.bf16 %v1219, %v1219
    %v1228 = vpack.c.bf16 %v1220, %v1220
    %v1229 = vpack.c.bf16 %v1221, %v1221
    %v1230 = vpack.c.bf16 %v1222, %v1222
    %v1231 = vpack.c.bf16 %v1223, %v1223
    %v1232 = vpack.c.bf16 %v1224, %v1224
    %v1233 = vld [vmem:[%s5] sm:$0xff]
    %v1234 = vld [vmem:[%s5 + $0x8] sm:$0xff]
    %v1235 = vld [vmem:[%s5 + $0x10] sm:$0xff]
    %v1236 = vld [vmem:[%s5 + $0x18] sm:$0xff]
    %v1237 = vld [vmem:[%s5 + $0x20] sm:$0xff]
    %v1238 = vld [vmem:[%s5 + $0x28] sm:$0xff]
    %v1239 = vld [vmem:[%s5 + $0x30] sm:$0xff]
    %v1240 = vld [vmem:[%s5 + $0x38] sm:$0xff]
    %v1241 = vld [vmem:[%s5 + $0x40] sm:$0xff]
    %v1242 = vld [vmem:[%s5 + $0x48] sm:$0xff]
    %v1243 = vld [vmem:[%s5 + $0x50] sm:$0xff]
    %v1244 = vld [vmem:[%s5 + $0x58] sm:$0xff]
    %v1245 = vld [vmem:[%s5 + $0x60] sm:$0xff]
    %v1246 = vld [vmem:[%s5 + $0x68] sm:$0xff]
    %v1247 = vld [vmem:[%s5 + $0x70] sm:$0xff]
    %v1248 = vld [vmem:[%s5 + $0x78] sm:$0xff]
    %v1249 = vld [vmem:[%s5 + $0x80] sm:$0xff]
    %v1250 = vld [vmem:[%s5 + $0x88] sm:$0xff]
    %v1251 = vld [vmem:[%s5 + $0x90] sm:$0xff]
    %v1252 = vld [vmem:[%s5 + $0x98] sm:$0xff]
    %v1253 = vld [vmem:[%s5 + $0xa0] sm:$0xff]
    %v1254 = vld [vmem:[%s5 + $0xa8] sm:$0xff]
    %v1255 = vld [vmem:[%s5 + $0xb0] sm:$0xff]
    %v1256 = vld [vmem:[%s5 + $0xb8] sm:$0xff]
    %v1257 = vld [vmem:[%s5 + $0xc0] sm:$0xff]
    %v1258 = vld [vmem:[%s5 + $0xc8] sm:$0xff]
    %v1259 = vld [vmem:[%s5 + $0xd0] sm:$0xff]
    %v1260 = vld [vmem:[%s5 + $0xd8] sm:$0xff]
    %v1261 = vld [vmem:[%s5 + $0xe0] sm:$0xff]
    %v1262 = vld [vmem:[%s5 + $0xe8] sm:$0xff]
    %v1263 = vld [vmem:[%s5 + $0xf0] sm:$0xff]
    %v1264 = vld [vmem:[%s5 + $0xf8] sm:$0xff]
    %v1265 = vld [vmem:[%s5 + $0x100] sm:$0xff]
    %v1266 = vld [vmem:[%s5 + $0x108] sm:$0xff]
    %v1267 = vld [vmem:[%s5 + $0x110] sm:$0xff]
    %v1268 = vld [vmem:[%s5 + $0x118] sm:$0xff]
    %v1269 = vld [vmem:[%s5 + $0x120] sm:$0xff]
    %v1270 = vld [vmem:[%s5 + $0x128] sm:$0xff]
    %v1271 = vld [vmem:[%s5 + $0x130] sm:$0xff]
    %v1272 = vld [vmem:[%s5 + $0x138] sm:$0xff]
    %v1273 = vld [vmem:[%s5 + $0x140] sm:$0xff]
    %v1274 = vld [vmem:[%s5 + $0x148] sm:$0xff]
    %v1275 = vld [vmem:[%s5 + $0x150] sm:$0xff]
    %v1276 = vld [vmem:[%s5 + $0x158] sm:$0xff]
    %v1277 = vld [vmem:[%s5 + $0x160] sm:$0xff]
    %v1278 = vld [vmem:[%s5 + $0x168] sm:$0xff]
    %v1279 = vld [vmem:[%s5 + $0x170] sm:$0xff]
    %v1280 = vld [vmem:[%s5 + $0x178] sm:$0xff]
    %v1281 = vld [vmem:[%s5 + $0x180] sm:$0xff]
    %v1282 = vld [vmem:[%s5 + $0x188] sm:$0xff]
    %v1283 = vld [vmem:[%s5 + $0x190] sm:$0xff]
    %v1284 = vld [vmem:[%s5 + $0x198] sm:$0xff]
    %v1285 = vld [vmem:[%s5 + $0x1a0] sm:$0xff]
    %v1286 = vld [vmem:[%s5 + $0x1a8] sm:$0xff]
    %v1287 = vld [vmem:[%s5 + $0x1b0] sm:$0xff]
    %v1288 = vld [vmem:[%s5 + $0x1b8] sm:$0xff]
    %v1289 = vld [vmem:[%s5 + $0x1c0] sm:$0xff]
    %v1290 = vld [vmem:[%s5 + $0x1c8] sm:$0xff]
    %v1291 = vld [vmem:[%s5 + $0x1d0] sm:$0xff]
    %v1292 = vld [vmem:[%s5 + $0x1d8] sm:$0xff]
    %v1293 = vld [vmem:[%s5 + $0x1e0] sm:$0xff]
    %v1294 = vld [vmem:[%s5 + $0x1e8] sm:$0xff]
    %v1295 = vld [vmem:[%s5 + $0x1f0] sm:$0xff]
    %v1296 = vld [vmem:[%s5 + $0x1f8] sm:$0xff]
    %v1297 = vld [vmem:[%s5 + $0x200] sm:$0xff]
    %v1298 = vld [vmem:[%s5 + $0x208] sm:$0xff]
    %v1299 = vld [vmem:[%s5 + $0x210] sm:$0xff]
    %v1300 = vld [vmem:[%s5 + $0x218] sm:$0xff]
    %v1301 = vld [vmem:[%s5 + $0x220] sm:$0xff]
    %v1302 = vld [vmem:[%s5 + $0x228] sm:$0xff]
    %v1303 = vld [vmem:[%s5 + $0x230] sm:$0xff]
    %v1304 = vld [vmem:[%s5 + $0x238] sm:$0xff]
    %v1305 = vld [vmem:[%s5 + $0x240] sm:$0xff]
    %v1306 = vld [vmem:[%s5 + $0x248] sm:$0xff]
    %v1307 = vld [vmem:[%s5 + $0x250] sm:$0xff]
    %v1308 = vld [vmem:[%s5 + $0x258] sm:$0xff]
    %v1309 = vld [vmem:[%s5 + $0x260] sm:$0xff]
    %v1310 = vld [vmem:[%s5 + $0x268] sm:$0xff]
    %v1311 = vld [vmem:[%s5 + $0x270] sm:$0xff]
    %v1312 = vld [vmem:[%s5 + $0x278] sm:$0xff]
    %v1313 = vld [vmem:[%s5 + $0x280] sm:$0xff]
    %v1314 = vld [vmem:[%s5 + $0x288] sm:$0xff]
    %v1315 = vld [vmem:[%s5 + $0x290] sm:$0xff]
    %v1316 = vld [vmem:[%s5 + $0x298] sm:$0xff]
    %v1317 = vld [vmem:[%s5 + $0x2a0] sm:$0xff]
    %v1318 = vld [vmem:[%s5 + $0x2a8] sm:$0xff]
    %v1319 = vld [vmem:[%s5 + $0x2b0] sm:$0xff]
    %v1320 = vld [vmem:[%s5 + $0x2b8] sm:$0xff]
    %v1321 = vld [vmem:[%s5 + $0x2c0] sm:$0xff]
    %v1322 = vld [vmem:[%s5 + $0x2c8] sm:$0xff]
    %v1323 = vld [vmem:[%s5 + $0x2d0] sm:$0xff]
    %v1324 = vld [vmem:[%s5 + $0x2d8] sm:$0xff]
    %v1325 = vld [vmem:[%s5 + $0x2e0] sm:$0xff]
    %v1326 = vld [vmem:[%s5 + $0x2e8] sm:$0xff]
    %v1327 = vld [vmem:[%s5 + $0x2f0] sm:$0xff]
    %v1328 = vld [vmem:[%s5 + $0x2f8] sm:$0xff]
    %v1329 = vld [vmem:[%s5 + $0x300] sm:$0xff]
    %v1330 = vld [vmem:[%s5 + $0x308] sm:$0xff]
    %v1331 = vld [vmem:[%s5 + $0x310] sm:$0xff]
    %v1332 = vld [vmem:[%s5 + $0x318] sm:$0xff]
    %v1333 = vld [vmem:[%s5 + $0x320] sm:$0xff]
    %v1334 = vld [vmem:[%s5 + $0x328] sm:$0xff]
    %v1335 = vld [vmem:[%s5 + $0x330] sm:$0xff]
    %v1336 = vld [vmem:[%s5 + $0x338] sm:$0xff]
    %v1337 = vld [vmem:[%s5 + $0x340] sm:$0xff]
    %v1338 = vld [vmem:[%s5 + $0x348] sm:$0xff]
    %v1339 = vld [vmem:[%s5 + $0x350] sm:$0xff]
    %v1340 = vld [vmem:[%s5 + $0x358] sm:$0xff]
    %v1341 = vld [vmem:[%s5 + $0x360] sm:$0xff]
    %v1342 = vld [vmem:[%s5 + $0x368] sm:$0xff]
    %v1343 = vld [vmem:[%s5 + $0x370] sm:$0xff]
    %v1344 = vld [vmem:[%s5 + $0x378] sm:$0xff]
    %v1345 = vld [vmem:[%s5 + $0x380] sm:$0xff]
    %v1346 = vld [vmem:[%s5 + $0x388] sm:$0xff]
    %v1347 = vld [vmem:[%s5 + $0x390] sm:$0xff]
    %v1348 = vld [vmem:[%s5 + $0x398] sm:$0xff]
    %v1349 = vld [vmem:[%s5 + $0x3a0] sm:$0xff]
    %v1350 = vld [vmem:[%s5 + $0x3a8] sm:$0xff]
    %v1351 = vld [vmem:[%s5 + $0x3b0] sm:$0xff]
    %v1352 = vld [vmem:[%s5 + $0x3b8] sm:$0xff]
    %v1353 = vld [vmem:[%s5 + $0x3c0] sm:$0xff]
    %v1354 = vld [vmem:[%s5 + $0x3c8] sm:$0xff]
    %v1355 = vld [vmem:[%s5 + $0x3d0] sm:$0xff]
    %v1356 = vld [vmem:[%s5 + $0x3d8] sm:$0xff]
    %v1357 = vld [vmem:[%s5 + $0x3e0] sm:$0xff]
    %v1358 = vld [vmem:[%s5 + $0x3e8] sm:$0xff]
    %v1359 = vld [vmem:[%s5 + $0x3f0] sm:$0xff]
    %v1360 = vld [vmem:[%s5 + $0x3f8] sm:$0xff]
    %v1361 = vld [vmem:[%s5 + $0x400] sm:$0xff]
    %v1362 = vld [vmem:[%s5 + $0x408] sm:$0xff]
    %v1363 = vld [vmem:[%s5 + $0x410] sm:$0xff]
    %v1364 = vld [vmem:[%s5 + $0x418] sm:$0xff]
    %v1365 = vld [vmem:[%s5 + $0x420] sm:$0xff]
    %v1366 = vld [vmem:[%s5 + $0x428] sm:$0xff]
    %v1367 = vld [vmem:[%s5 + $0x430] sm:$0xff]
    %v1368 = vld [vmem:[%s5 + $0x438] sm:$0xff]
    %v1369 = vld [vmem:[%s5 + $0x440] sm:$0xff]
    %v1370 = vld [vmem:[%s5 + $0x448] sm:$0xff]
    %v1371 = vld [vmem:[%s5 + $0x450] sm:$0xff]
    %v1372 = vld [vmem:[%s5 + $0x458] sm:$0xff]
    %v1373 = vld [vmem:[%s5 + $0x460] sm:$0xff]
    %v1374 = vld [vmem:[%s5 + $0x468] sm:$0xff]
    %v1375 = vld [vmem:[%s5 + $0x470] sm:$0xff]
    %v1376 = vld [vmem:[%s5 + $0x478] sm:$0xff]
    %v1377 = vld [vmem:[%s5 + $0x480] sm:$0xff]
    %v1378 = vld [vmem:[%s5 + $0x488] sm:$0xff]
    %v1379 = vld [vmem:[%s5 + $0x490] sm:$0xff]
    %v1380 = vld [vmem:[%s5 + $0x498] sm:$0xff]
    %v1381 = vld [vmem:[%s5 + $0x4a0] sm:$0xff]
    %v1382 = vld [vmem:[%s5 + $0x4a8] sm:$0xff]
    %v1383 = vld [vmem:[%s5 + $0x4b0] sm:$0xff]
    %v1384 = vld [vmem:[%s5 + $0x4b8] sm:$0xff]
    %v1385 = vld [vmem:[%s5 + $0x4c0] sm:$0xff]
    %v1386 = vld [vmem:[%s5 + $0x4c8] sm:$0xff]
    %v1387 = vld [vmem:[%s5 + $0x4d0] sm:$0xff]
    %v1388 = vld [vmem:[%s5 + $0x4d8] sm:$0xff]
    %v1389 = vld [vmem:[%s5 + $0x4e0] sm:$0xff]
    %v1390 = vld [vmem:[%s5 + $0x4e8] sm:$0xff]
    %v1391 = vld [vmem:[%s5 + $0x4f0] sm:$0xff]
    %v1392 = vld [vmem:[%s5 + $0x4f8] sm:$0xff]
    %v1393 = vld [vmem:[%s5 + $0x500] sm:$0xff]
    %v1394 = vld [vmem:[%s5 + $0x508] sm:$0xff]
    %v1395 = vld [vmem:[%s5 + $0x510] sm:$0xff]
    %v1396 = vld [vmem:[%s5 + $0x518] sm:$0xff]
    %v1397 = vld [vmem:[%s5 + $0x520] sm:$0xff]
    %v1398 = vld [vmem:[%s5 + $0x528] sm:$0xff]
    %v1399 = vld [vmem:[%s5 + $0x530] sm:$0xff]
    %v1400 = vld [vmem:[%s5 + $0x538] sm:$0xff]
    %v1401 = vld [vmem:[%s5 + $0x540] sm:$0xff]
    %v1402 = vld [vmem:[%s5 + $0x548] sm:$0xff]
    %v1403 = vld [vmem:[%s5 + $0x550] sm:$0xff]
    %v1404 = vld [vmem:[%s5 + $0x558] sm:$0xff]
    %v1405 = vld [vmem:[%s5 + $0x560] sm:$0xff]
    %v1406 = vld [vmem:[%s5 + $0x568] sm:$0xff]
    %v1407 = vld [vmem:[%s5 + $0x570] sm:$0xff]
    %v1408 = vld [vmem:[%s5 + $0x578] sm:$0xff]
    %v1409 = vld [vmem:[%s5 + $0x580] sm:$0xff]
    %v1410 = vld [vmem:[%s5 + $0x588] sm:$0xff]
    %v1411 = vld [vmem:[%s5 + $0x590] sm:$0xff]
    %v1412 = vld [vmem:[%s5 + $0x598] sm:$0xff]
    %v1413 = vld [vmem:[%s5 + $0x5a0] sm:$0xff]
    %v1414 = vld [vmem:[%s5 + $0x5a8] sm:$0xff]
    %v1415 = vld [vmem:[%s5 + $0x5b0] sm:$0xff]
    %v1416 = vld [vmem:[%s5 + $0x5b8] sm:$0xff]
    %v1417 = vld [vmem:[%s5 + $0x5c0] sm:$0xff]
    %v1418 = vld [vmem:[%s5 + $0x5c8] sm:$0xff]
    %v1419 = vld [vmem:[%s5 + $0x5d0] sm:$0xff]
    %v1420 = vld [vmem:[%s5 + $0x5d8] sm:$0xff]
    %v1421 = vld [vmem:[%s5 + $0x5e0] sm:$0xff]
    %v1422 = vld [vmem:[%s5 + $0x5e8] sm:$0xff]
    %v1423 = vld [vmem:[%s5 + $0x5f0] sm:$0xff]
    %v1424 = vld [vmem:[%s5 + $0x5f8] sm:$0xff]
    %v1425 = vld [vmem:[%s5 + $0x600] sm:$0xff]
    %v1426 = vld [vmem:[%s5 + $0x608] sm:$0xff]
    %v1427 = vld [vmem:[%s5 + $0x610] sm:$0xff]
    %v1428 = vld [vmem:[%s5 + $0x618] sm:$0xff]
    %v1429 = vld [vmem:[%s5 + $0x620] sm:$0xff]
    %v1430 = vld [vmem:[%s5 + $0x628] sm:$0xff]
    %v1431 = vld [vmem:[%s5 + $0x630] sm:$0xff]
    %v1432 = vld [vmem:[%s5 + $0x638] sm:$0xff]
    %v1433 = vld [vmem:[%s5 + $0x640] sm:$0xff]
    %v1434 = vld [vmem:[%s5 + $0x648] sm:$0xff]
    %v1435 = vld [vmem:[%s5 + $0x650] sm:$0xff]
    %v1436 = vld [vmem:[%s5 + $0x658] sm:$0xff]
    %v1437 = vld [vmem:[%s5 + $0x660] sm:$0xff]
    %v1438 = vld [vmem:[%s5 + $0x668] sm:$0xff]
    %v1439 = vld [vmem:[%s5 + $0x670] sm:$0xff]
    %v1440 = vld [vmem:[%s5 + $0x678] sm:$0xff]
    %v1441 = vld [vmem:[%s5 + $0x680] sm:$0xff]
    %v1442 = vld [vmem:[%s5 + $0x688] sm:$0xff]
    %v1443 = vld [vmem:[%s5 + $0x690] sm:$0xff]
    %v1444 = vld [vmem:[%s5 + $0x698] sm:$0xff]
    %v1445 = vld [vmem:[%s5 + $0x6a0] sm:$0xff]
    %v1446 = vld [vmem:[%s5 + $0x6a8] sm:$0xff]
    %v1447 = vld [vmem:[%s5 + $0x6b0] sm:$0xff]
    %v1448 = vld [vmem:[%s5 + $0x6b8] sm:$0xff]
    %v1449 = vld [vmem:[%s5 + $0x6c0] sm:$0xff]
    %v1450 = vld [vmem:[%s5 + $0x6c8] sm:$0xff]
    %v1451 = vld [vmem:[%s5 + $0x6d0] sm:$0xff]
    %v1452 = vld [vmem:[%s5 + $0x6d8] sm:$0xff]
    %v1453 = vld [vmem:[%s5 + $0x6e0] sm:$0xff]
    %v1454 = vld [vmem:[%s5 + $0x6e8] sm:$0xff]
    %v1455 = vld [vmem:[%s5 + $0x6f0] sm:$0xff]
    %v1456 = vld [vmem:[%s5 + $0x6f8] sm:$0xff]
    %v1457 = vld [vmem:[%s5 + $0x700] sm:$0xff]
    %v1458 = vld [vmem:[%s5 + $0x708] sm:$0xff]
    %v1459 = vld [vmem:[%s5 + $0x710] sm:$0xff]
    %v1460 = vld [vmem:[%s5 + $0x718] sm:$0xff]
    %v1461 = vld [vmem:[%s5 + $0x720] sm:$0xff]
    %v1462 = vld [vmem:[%s5 + $0x728] sm:$0xff]
    %v1463 = vld [vmem:[%s5 + $0x730] sm:$0xff]
    %v1464 = vld [vmem:[%s5 + $0x738] sm:$0xff]
    %v1465 = vld [vmem:[%s5 + $0x740] sm:$0xff]
    %v1466 = vld [vmem:[%s5 + $0x748] sm:$0xff]
    %v1467 = vld [vmem:[%s5 + $0x750] sm:$0xff]
    %v1468 = vld [vmem:[%s5 + $0x758] sm:$0xff]
    %v1469 = vld [vmem:[%s5 + $0x760] sm:$0xff]
    %v1470 = vld [vmem:[%s5 + $0x768] sm:$0xff]
    %v1471 = vld [vmem:[%s5 + $0x770] sm:$0xff]
    %v1472 = vld [vmem:[%s5 + $0x778] sm:$0xff]
    %v1473 = vld [vmem:[%s5 + $0x780] sm:$0xff]
    %v1474 = vld [vmem:[%s5 + $0x788] sm:$0xff]
    %v1475 = vld [vmem:[%s5 + $0x790] sm:$0xff]
    %v1476 = vld [vmem:[%s5 + $0x798] sm:$0xff]
    %v1477 = vld [vmem:[%s5 + $0x7a0] sm:$0xff]
    %v1478 = vld [vmem:[%s5 + $0x7a8] sm:$0xff]
    %v1479 = vld [vmem:[%s5 + $0x7b0] sm:$0xff]
    %v1480 = vld [vmem:[%s5 + $0x7b8] sm:$0xff]
    %v1481 = vld [vmem:[%s5 + $0x7c0] sm:$0xff]
    %v1482 = vld [vmem:[%s5 + $0x7c8] sm:$0xff]
    %v1483 = vld [vmem:[%s5 + $0x7d0] sm:$0xff]
    %v1484 = vld [vmem:[%s5 + $0x7d8] sm:$0xff]
    %v1485 = vld [vmem:[%s5 + $0x7e0] sm:$0xff]
    %v1486 = vld [vmem:[%s5 + $0x7e8] sm:$0xff]
    %v1487 = vld [vmem:[%s5 + $0x7f0] sm:$0xff]
    %v1488 = vld [vmem:[%s5 + $0x7f8] sm:$0xff]
    %v1489 = vld [vmem:[%s6] sm:$0xf]
    %v1491 = vlaneseq
    %v1492 = vshrl.u32 %v1491, 7
    %v1493 = vsub.s32 0, %v1492
    %v1494 = vrot.slane %v1489, %v1493
    %v1495 = vlaneseq
    %v1496 = vshrl.u32 %v1495, 7
    %v1497 = vsub.s32 1, %v1496
    %v1498 = vrot.slane %v1489, %v1497
    %v1499 = vlaneseq
    %v1500 = vshrl.u32 %v1499, 7
    %v1501 = vsub.s32 2, %v1500
    %v1502 = vrot.slane %v1489, %v1501
    %v1503 = vlaneseq
    %v1504 = vshrl.u32 %v1503, 7
    %v1505 = vsub.s32 3, %v1504
    %v1506 = vrot.slane %v1489, %v1505
    %v1767 = vunpack.c.l.b16 %v1233
    %v1768 = vunpack.c.h.b16 %v1233
    %v1769 = vunpack.c.l.b16 %v1234
    %v1770 = vunpack.c.h.b16 %v1234
    %v1771 = vunpack.c.l.b16 %v1235
    %v1772 = vunpack.c.h.b16 %v1235
    %v1773 = vunpack.c.l.b16 %v1236
    %v1774 = vunpack.c.h.b16 %v1236
    %v1775 = vunpack.c.l.b16 %v1237
    %v1776 = vunpack.c.h.b16 %v1237
    %v1777 = vunpack.c.l.b16 %v1238
    %v1778 = vunpack.c.h.b16 %v1238
    %v1779 = vunpack.c.l.b16 %v1239
    %v1780 = vunpack.c.h.b16 %v1239
    %v1781 = vunpack.c.l.b16 %v1240
    %v1782 = vunpack.c.h.b16 %v1240
    %v1783 = vunpack.c.l.b16 %v1241
    %v1784 = vunpack.c.h.b16 %v1241
    %v1785 = vunpack.c.l.b16 %v1242
    %v1786 = vunpack.c.h.b16 %v1242
    %v1787 = vunpack.c.l.b16 %v1243
    %v1788 = vunpack.c.h.b16 %v1243
    %v1789 = vunpack.c.l.b16 %v1244
    %v1790 = vunpack.c.h.b16 %v1244
    %v1791 = vunpack.c.l.b16 %v1245
    %v1792 = vunpack.c.h.b16 %v1245
    %v1793 = vunpack.c.l.b16 %v1246
    %v1794 = vunpack.c.h.b16 %v1246
    %v1795 = vunpack.c.l.b16 %v1247
    %v1796 = vunpack.c.h.b16 %v1247
    %v1797 = vunpack.c.l.b16 %v1248
    %v1798 = vunpack.c.h.b16 %v1248
    %v1799 = vunpack.c.l.b16 %v1249
    %v1800 = vunpack.c.h.b16 %v1249
    %v1801 = vunpack.c.l.b16 %v1250
    %v1802 = vunpack.c.h.b16 %v1250
    %v1803 = vunpack.c.l.b16 %v1251
    %v1804 = vunpack.c.h.b16 %v1251
    %v1805 = vunpack.c.l.b16 %v1252
    %v1806 = vunpack.c.h.b16 %v1252
    %v1807 = vunpack.c.l.b16 %v1253
    %v1808 = vunpack.c.h.b16 %v1253
    %v1809 = vunpack.c.l.b16 %v1254
    %v1810 = vunpack.c.h.b16 %v1254
    %v1811 = vunpack.c.l.b16 %v1255
    %v1812 = vunpack.c.h.b16 %v1255
    %v1813 = vunpack.c.l.b16 %v1256
    %v1814 = vunpack.c.h.b16 %v1256
    %v1815 = vunpack.c.l.b16 %v1257
    %v1816 = vunpack.c.h.b16 %v1257
    %v1817 = vunpack.c.l.b16 %v1258
    %v1818 = vunpack.c.h.b16 %v1258
    %v1819 = vunpack.c.l.b16 %v1259
    %v1820 = vunpack.c.h.b16 %v1259
    %v1821 = vunpack.c.l.b16 %v1260
    %v1822 = vunpack.c.h.b16 %v1260
    %v1823 = vunpack.c.l.b16 %v1261
    %v1824 = vunpack.c.h.b16 %v1261
    %v1825 = vunpack.c.l.b16 %v1262
    %v1826 = vunpack.c.h.b16 %v1262
    %v1827 = vunpack.c.l.b16 %v1263
    %v1828 = vunpack.c.h.b16 %v1263
    %v1829 = vunpack.c.l.b16 %v1264
    %v1830 = vunpack.c.h.b16 %v1264
    %v1831 = vunpack.c.l.b16 %v1265
    %v1832 = vunpack.c.h.b16 %v1265
    %v1833 = vunpack.c.l.b16 %v1266
    %v1834 = vunpack.c.h.b16 %v1266
    %v1835 = vunpack.c.l.b16 %v1267
    %v1836 = vunpack.c.h.b16 %v1267
    %v1837 = vunpack.c.l.b16 %v1268
    %v1838 = vunpack.c.h.b16 %v1268
    %v1839 = vunpack.c.l.b16 %v1269
    %v1840 = vunpack.c.h.b16 %v1269
    %v1841 = vunpack.c.l.b16 %v1270
    %v1842 = vunpack.c.h.b16 %v1270
    %v1843 = vunpack.c.l.b16 %v1271
    %v1844 = vunpack.c.h.b16 %v1271
    %v1845 = vunpack.c.l.b16 %v1272
    %v1846 = vunpack.c.h.b16 %v1272
    %v1847 = vunpack.c.l.b16 %v1273
    %v1848 = vunpack.c.h.b16 %v1273
    %v1849 = vunpack.c.l.b16 %v1274
    %v1850 = vunpack.c.h.b16 %v1274
    %v1851 = vunpack.c.l.b16 %v1275
    %v1852 = vunpack.c.h.b16 %v1275
    %v1853 = vunpack.c.l.b16 %v1276
    %v1854 = vunpack.c.h.b16 %v1276
    %v1855 = vunpack.c.l.b16 %v1277
    %v1856 = vunpack.c.h.b16 %v1277
    %v1857 = vunpack.c.l.b16 %v1278
    %v1858 = vunpack.c.h.b16 %v1278
    %v1859 = vunpack.c.l.b16 %v1279
    %v1860 = vunpack.c.h.b16 %v1279
    %v1861 = vunpack.c.l.b16 %v1280
    %v1862 = vunpack.c.h.b16 %v1280
    %v1863 = vunpack.c.l.b16 %v1281
    %v1864 = vunpack.c.h.b16 %v1281
    %v1865 = vunpack.c.l.b16 %v1282
    %v1866 = vunpack.c.h.b16 %v1282
    %v1867 = vunpack.c.l.b16 %v1283
    %v1868 = vunpack.c.h.b16 %v1283
    %v1869 = vunpack.c.l.b16 %v1284
    %v1870 = vunpack.c.h.b16 %v1284
    %v1871 = vunpack.c.l.b16 %v1285
    %v1872 = vunpack.c.h.b16 %v1285
    %v1873 = vunpack.c.l.b16 %v1286
    %v1874 = vunpack.c.h.b16 %v1286
    %v1875 = vunpack.c.l.b16 %v1287
    %v1876 = vunpack.c.h.b16 %v1287
    %v1877 = vunpack.c.l.b16 %v1288
    %v1878 = vunpack.c.h.b16 %v1288
    %v1879 = vunpack.c.l.b16 %v1289
    %v1880 = vunpack.c.h.b16 %v1289
    %v1881 = vunpack.c.l.b16 %v1290
    %v1882 = vunpack.c.h.b16 %v1290
    %v1883 = vunpack.c.l.b16 %v1291
    %v1884 = vunpack.c.h.b16 %v1291
    %v1885 = vunpack.c.l.b16 %v1292
    %v1886 = vunpack.c.h.b16 %v1292
    %v1887 = vunpack.c.l.b16 %v1293
    %v1888 = vunpack.c.h.b16 %v1293
    %v1889 = vunpack.c.l.b16 %v1294
    %v1890 = vunpack.c.h.b16 %v1294
    %v1891 = vunpack.c.l.b16 %v1295
    %v1892 = vunpack.c.h.b16 %v1295
    %v1893 = vunpack.c.l.b16 %v1296
    %v1894 = vunpack.c.h.b16 %v1296
    %v1895 = vunpack.c.l.b16 %v1297
    %v1896 = vunpack.c.h.b16 %v1297
    %v1897 = vunpack.c.l.b16 %v1298
    %v1898 = vunpack.c.h.b16 %v1298
    %v1899 = vunpack.c.l.b16 %v1299
    %v1900 = vunpack.c.h.b16 %v1299
    %v1901 = vunpack.c.l.b16 %v1300
    %v1902 = vunpack.c.h.b16 %v1300
    %v1903 = vunpack.c.l.b16 %v1301
    %v1904 = vunpack.c.h.b16 %v1301
    %v1905 = vunpack.c.l.b16 %v1302
    %v1906 = vunpack.c.h.b16 %v1302
    %v1907 = vunpack.c.l.b16 %v1303
    %v1908 = vunpack.c.h.b16 %v1303
    %v1909 = vunpack.c.l.b16 %v1304
    %v1910 = vunpack.c.h.b16 %v1304
    %v1911 = vunpack.c.l.b16 %v1305
    %v1912 = vunpack.c.h.b16 %v1305
    %v1913 = vunpack.c.l.b16 %v1306
    %v1914 = vunpack.c.h.b16 %v1306
    %v1915 = vunpack.c.l.b16 %v1307
    %v1916 = vunpack.c.h.b16 %v1307
    %v1917 = vunpack.c.l.b16 %v1308
    %v1918 = vunpack.c.h.b16 %v1308
    %v1919 = vunpack.c.l.b16 %v1309
    %v1920 = vunpack.c.h.b16 %v1309
    %v1921 = vunpack.c.l.b16 %v1310
    %v1922 = vunpack.c.h.b16 %v1310
    %v1923 = vunpack.c.l.b16 %v1311
    %v1924 = vunpack.c.h.b16 %v1311
    %v1925 = vunpack.c.l.b16 %v1312
    %v1926 = vunpack.c.h.b16 %v1312
    %v1927 = vunpack.c.l.b16 %v1313
    %v1928 = vunpack.c.h.b16 %v1313
    %v1929 = vunpack.c.l.b16 %v1314
    %v1930 = vunpack.c.h.b16 %v1314
    %v1931 = vunpack.c.l.b16 %v1315
    %v1932 = vunpack.c.h.b16 %v1315
    %v1933 = vunpack.c.l.b16 %v1316
    %v1934 = vunpack.c.h.b16 %v1316
    %v1935 = vunpack.c.l.b16 %v1317
    %v1936 = vunpack.c.h.b16 %v1317
    %v1937 = vunpack.c.l.b16 %v1318
    %v1938 = vunpack.c.h.b16 %v1318
    %v1939 = vunpack.c.l.b16 %v1319
    %v1940 = vunpack.c.h.b16 %v1319
    %v1941 = vunpack.c.l.b16 %v1320
    %v1942 = vunpack.c.h.b16 %v1320
    %v1943 = vunpack.c.l.b16 %v1321
    %v1944 = vunpack.c.h.b16 %v1321
    %v1945 = vunpack.c.l.b16 %v1322
    %v1946 = vunpack.c.h.b16 %v1322
    %v1947 = vunpack.c.l.b16 %v1323
    %v1948 = vunpack.c.h.b16 %v1323
    %v1949 = vunpack.c.l.b16 %v1324
    %v1950 = vunpack.c.h.b16 %v1324
    %v1951 = vunpack.c.l.b16 %v1325
    %v1952 = vunpack.c.h.b16 %v1325
    %v1953 = vunpack.c.l.b16 %v1326
    %v1954 = vunpack.c.h.b16 %v1326
    %v1955 = vunpack.c.l.b16 %v1327
    %v1956 = vunpack.c.h.b16 %v1327
    %v1957 = vunpack.c.l.b16 %v1328
    %v1958 = vunpack.c.h.b16 %v1328
    %v1959 = vunpack.c.l.b16 %v1329
    %v1960 = vunpack.c.h.b16 %v1329
    %v1961 = vunpack.c.l.b16 %v1330
    %v1962 = vunpack.c.h.b16 %v1330
    %v1963 = vunpack.c.l.b16 %v1331
    %v1964 = vunpack.c.h.b16 %v1331
    %v1965 = vunpack.c.l.b16 %v1332
    %v1966 = vunpack.c.h.b16 %v1332
    %v1967 = vunpack.c.l.b16 %v1333
    %v1968 = vunpack.c.h.b16 %v1333
    %v1969 = vunpack.c.l.b16 %v1334
    %v1970 = vunpack.c.h.b16 %v1334
    %v1971 = vunpack.c.l.b16 %v1335
    %v1972 = vunpack.c.h.b16 %v1335
    %v1973 = vunpack.c.l.b16 %v1336
    %v1974 = vunpack.c.h.b16 %v1336
    %v1975 = vunpack.c.l.b16 %v1337
    %v1976 = vunpack.c.h.b16 %v1337
    %v1977 = vunpack.c.l.b16 %v1338
    %v1978 = vunpack.c.h.b16 %v1338
    %v1979 = vunpack.c.l.b16 %v1339
    %v1980 = vunpack.c.h.b16 %v1339
    %v1981 = vunpack.c.l.b16 %v1340
    %v1982 = vunpack.c.h.b16 %v1340
    %v1983 = vunpack.c.l.b16 %v1341
    %v1984 = vunpack.c.h.b16 %v1341
    %v1985 = vunpack.c.l.b16 %v1342
    %v1986 = vunpack.c.h.b16 %v1342
    %v1987 = vunpack.c.l.b16 %v1343
    %v1988 = vunpack.c.h.b16 %v1343
    %v1989 = vunpack.c.l.b16 %v1344
    %v1990 = vunpack.c.h.b16 %v1344
    %v1991 = vunpack.c.l.b16 %v1345
    %v1992 = vunpack.c.h.b16 %v1345
    %v1993 = vunpack.c.l.b16 %v1346
    %v1994 = vunpack.c.h.b16 %v1346
    %v1995 = vunpack.c.l.b16 %v1347
    %v1996 = vunpack.c.h.b16 %v1347
    %v1997 = vunpack.c.l.b16 %v1348
    %v1998 = vunpack.c.h.b16 %v1348
    %v1999 = vunpack.c.l.b16 %v1349
    %v2000 = vunpack.c.h.b16 %v1349
    %v2001 = vunpack.c.l.b16 %v1350
    %v2002 = vunpack.c.h.b16 %v1350
    %v2003 = vunpack.c.l.b16 %v1351
    %v2004 = vunpack.c.h.b16 %v1351
    %v2005 = vunpack.c.l.b16 %v1352
    %v2006 = vunpack.c.h.b16 %v1352
    %v2007 = vunpack.c.l.b16 %v1353
    %v2008 = vunpack.c.h.b16 %v1353
    %v2009 = vunpack.c.l.b16 %v1354
    %v2010 = vunpack.c.h.b16 %v1354
    %v2011 = vunpack.c.l.b16 %v1355
    %v2012 = vunpack.c.h.b16 %v1355
    %v2013 = vunpack.c.l.b16 %v1356
    %v2014 = vunpack.c.h.b16 %v1356
    %v2015 = vunpack.c.l.b16 %v1357
    %v2016 = vunpack.c.h.b16 %v1357
    %v2017 = vunpack.c.l.b16 %v1358
    %v2018 = vunpack.c.h.b16 %v1358
    %v2019 = vunpack.c.l.b16 %v1359
    %v2020 = vunpack.c.h.b16 %v1359
    %v2021 = vunpack.c.l.b16 %v1360
    %v2022 = vunpack.c.h.b16 %v1360
    %v2023 = vunpack.c.l.b16 %v1361
    %v2024 = vunpack.c.h.b16 %v1361
    %v2025 = vunpack.c.l.b16 %v1362
    %v2026 = vunpack.c.h.b16 %v1362
    %v2027 = vunpack.c.l.b16 %v1363
    %v2028 = vunpack.c.h.b16 %v1363
    %v2029 = vunpack.c.l.b16 %v1364
    %v2030 = vunpack.c.h.b16 %v1364
    %v2031 = vunpack.c.l.b16 %v1365
    %v2032 = vunpack.c.h.b16 %v1365
    %v2033 = vunpack.c.l.b16 %v1366
    %v2034 = vunpack.c.h.b16 %v1366
    %v2035 = vunpack.c.l.b16 %v1367
    %v2036 = vunpack.c.h.b16 %v1367
    %v2037 = vunpack.c.l.b16 %v1368
    %v2038 = vunpack.c.h.b16 %v1368
    %v2039 = vunpack.c.l.b16 %v1369
    %v2040 = vunpack.c.h.b16 %v1369
    %v2041 = vunpack.c.l.b16 %v1370
    %v2042 = vunpack.c.h.b16 %v1370
    %v2043 = vunpack.c.l.b16 %v1371
    %v2044 = vunpack.c.h.b16 %v1371
    %v2045 = vunpack.c.l.b16 %v1372
    %v2046 = vunpack.c.h.b16 %v1372
    %v2047 = vunpack.c.l.b16 %v1373
    %v2048 = vunpack.c.h.b16 %v1373
    %v2049 = vunpack.c.l.b16 %v1374
    %v2050 = vunpack.c.h.b16 %v1374
    %v2051 = vunpack.c.l.b16 %v1375
    %v2052 = vunpack.c.h.b16 %v1375
    %v2053 = vunpack.c.l.b16 %v1376
    %v2054 = vunpack.c.h.b16 %v1376
    %v2055 = vunpack.c.l.b16 %v1377
    %v2056 = vunpack.c.h.b16 %v1377
    %v2057 = vunpack.c.l.b16 %v1378
    %v2058 = vunpack.c.h.b16 %v1378
    %v2059 = vunpack.c.l.b16 %v1379
    %v2060 = vunpack.c.h.b16 %v1379
    %v2061 = vunpack.c.l.b16 %v1380
    %v2062 = vunpack.c.h.b16 %v1380
    %v2063 = vunpack.c.l.b16 %v1381
    %v2064 = vunpack.c.h.b16 %v1381
    %v2065 = vunpack.c.l.b16 %v1382
    %v2066 = vunpack.c.h.b16 %v1382
    %v2067 = vunpack.c.l.b16 %v1383
    %v2068 = vunpack.c.h.b16 %v1383
    %v2069 = vunpack.c.l.b16 %v1384
    %v2070 = vunpack.c.h.b16 %v1384
    %v2071 = vunpack.c.l.b16 %v1385
    %v2072 = vunpack.c.h.b16 %v1385
    %v2073 = vunpack.c.l.b16 %v1386
    %v2074 = vunpack.c.h.b16 %v1386
    %v2075 = vunpack.c.l.b16 %v1387
    %v2076 = vunpack.c.h.b16 %v1387
    %v2077 = vunpack.c.l.b16 %v1388
    %v2078 = vunpack.c.h.b16 %v1388
    %v2079 = vunpack.c.l.b16 %v1389
    %v2080 = vunpack.c.h.b16 %v1389
    %v2081 = vunpack.c.l.b16 %v1390
    %v2082 = vunpack.c.h.b16 %v1390
    %v2083 = vunpack.c.l.b16 %v1391
    %v2084 = vunpack.c.h.b16 %v1391
    %v2085 = vunpack.c.l.b16 %v1392
    %v2086 = vunpack.c.h.b16 %v1392
    %v2087 = vunpack.c.l.b16 %v1393
    %v2088 = vunpack.c.h.b16 %v1393
    %v2089 = vunpack.c.l.b16 %v1394
    %v2090 = vunpack.c.h.b16 %v1394
    %v2091 = vunpack.c.l.b16 %v1395
    %v2092 = vunpack.c.h.b16 %v1395
    %v2093 = vunpack.c.l.b16 %v1396
    %v2094 = vunpack.c.h.b16 %v1396
    %v2095 = vunpack.c.l.b16 %v1397
    %v2096 = vunpack.c.h.b16 %v1397
    %v2097 = vunpack.c.l.b16 %v1398
    %v2098 = vunpack.c.h.b16 %v1398
    %v2099 = vunpack.c.l.b16 %v1399
    %v2100 = vunpack.c.h.b16 %v1399
    %v2101 = vunpack.c.l.b16 %v1400
    %v2102 = vunpack.c.h.b16 %v1400
    %v2103 = vunpack.c.l.b16 %v1401
    %v2104 = vunpack.c.h.b16 %v1401
    %v2105 = vunpack.c.l.b16 %v1402
    %v2106 = vunpack.c.h.b16 %v1402
    %v2107 = vunpack.c.l.b16 %v1403
    %v2108 = vunpack.c.h.b16 %v1403
    %v2109 = vunpack.c.l.b16 %v1404
    %v2110 = vunpack.c.h.b16 %v1404
    %v2111 = vunpack.c.l.b16 %v1405
    %v2112 = vunpack.c.h.b16 %v1405
    %v2113 = vunpack.c.l.b16 %v1406
    %v2114 = vunpack.c.h.b16 %v1406
    %v2115 = vunpack.c.l.b16 %v1407
    %v2116 = vunpack.c.h.b16 %v1407
    %v2117 = vunpack.c.l.b16 %v1408
    %v2118 = vunpack.c.h.b16 %v1408
    %v2119 = vunpack.c.l.b16 %v1409
    %v2120 = vunpack.c.h.b16 %v1409
    %v2121 = vunpack.c.l.b16 %v1410
    %v2122 = vunpack.c.h.b16 %v1410
    %v2123 = vunpack.c.l.b16 %v1411
    %v2124 = vunpack.c.h.b16 %v1411
    %v2125 = vunpack.c.l.b16 %v1412
    %v2126 = vunpack.c.h.b16 %v1412
    %v2127 = vunpack.c.l.b16 %v1413
    %v2128 = vunpack.c.h.b16 %v1413
    %v2129 = vunpack.c.l.b16 %v1414
    %v2130 = vunpack.c.h.b16 %v1414
    %v2131 = vunpack.c.l.b16 %v1415
    %v2132 = vunpack.c.h.b16 %v1415
    %v2133 = vunpack.c.l.b16 %v1416
    %v2134 = vunpack.c.h.b16 %v1416
    %v2135 = vunpack.c.l.b16 %v1417
    %v2136 = vunpack.c.h.b16 %v1417
    %v2137 = vunpack.c.l.b16 %v1418
    %v2138 = vunpack.c.h.b16 %v1418
    %v2139 = vunpack.c.l.b16 %v1419
    %v2140 = vunpack.c.h.b16 %v1419
    %v2141 = vunpack.c.l.b16 %v1420
    %v2142 = vunpack.c.h.b16 %v1420
    %v2143 = vunpack.c.l.b16 %v1421
    %v2144 = vunpack.c.h.b16 %v1421
    %v2145 = vunpack.c.l.b16 %v1422
    %v2146 = vunpack.c.h.b16 %v1422
    %v2147 = vunpack.c.l.b16 %v1423
    %v2148 = vunpack.c.h.b16 %v1423
    %v2149 = vunpack.c.l.b16 %v1424
    %v2150 = vunpack.c.h.b16 %v1424
    %v2151 = vunpack.c.l.b16 %v1425
    %v2152 = vunpack.c.h.b16 %v1425
    %v2153 = vunpack.c.l.b16 %v1426
    %v2154 = vunpack.c.h.b16 %v1426
    %v2155 = vunpack.c.l.b16 %v1427
    %v2156 = vunpack.c.h.b16 %v1427
    %v2157 = vunpack.c.l.b16 %v1428
    %v2158 = vunpack.c.h.b16 %v1428
    %v2159 = vunpack.c.l.b16 %v1429
    %v2160 = vunpack.c.h.b16 %v1429
    %v2161 = vunpack.c.l.b16 %v1430
    %v2162 = vunpack.c.h.b16 %v1430
    %v2163 = vunpack.c.l.b16 %v1431
    %v2164 = vunpack.c.h.b16 %v1431
    %v2165 = vunpack.c.l.b16 %v1432
    %v2166 = vunpack.c.h.b16 %v1432
    %v2167 = vunpack.c.l.b16 %v1433
    %v2168 = vunpack.c.h.b16 %v1433
    %v2169 = vunpack.c.l.b16 %v1434
    %v2170 = vunpack.c.h.b16 %v1434
    %v2171 = vunpack.c.l.b16 %v1435
    %v2172 = vunpack.c.h.b16 %v1435
    %v2173 = vunpack.c.l.b16 %v1436
    %v2174 = vunpack.c.h.b16 %v1436
    %v2175 = vunpack.c.l.b16 %v1437
    %v2176 = vunpack.c.h.b16 %v1437
    %v2177 = vunpack.c.l.b16 %v1438
    %v2178 = vunpack.c.h.b16 %v1438
    %v2179 = vunpack.c.l.b16 %v1439
    %v2180 = vunpack.c.h.b16 %v1439
    %v2181 = vunpack.c.l.b16 %v1440
    %v2182 = vunpack.c.h.b16 %v1440
    %v2183 = vunpack.c.l.b16 %v1441
    %v2184 = vunpack.c.h.b16 %v1441
    %v2185 = vunpack.c.l.b16 %v1442
    %v2186 = vunpack.c.h.b16 %v1442
    %v2187 = vunpack.c.l.b16 %v1443
    %v2188 = vunpack.c.h.b16 %v1443
    %v2189 = vunpack.c.l.b16 %v1444
    %v2190 = vunpack.c.h.b16 %v1444
    %v2191 = vunpack.c.l.b16 %v1445
    %v2192 = vunpack.c.h.b16 %v1445
    %v2193 = vunpack.c.l.b16 %v1446
    %v2194 = vunpack.c.h.b16 %v1446
    %v2195 = vunpack.c.l.b16 %v1447
    %v2196 = vunpack.c.h.b16 %v1447
    %v2197 = vunpack.c.l.b16 %v1448
    %v2198 = vunpack.c.h.b16 %v1448
    %v2199 = vunpack.c.l.b16 %v1449
    %v2200 = vunpack.c.h.b16 %v1449
    %v2201 = vunpack.c.l.b16 %v1450
    %v2202 = vunpack.c.h.b16 %v1450
    %v2203 = vunpack.c.l.b16 %v1451
    %v2204 = vunpack.c.h.b16 %v1451
    %v2205 = vunpack.c.l.b16 %v1452
    %v2206 = vunpack.c.h.b16 %v1452
    %v2207 = vunpack.c.l.b16 %v1453
    %v2208 = vunpack.c.h.b16 %v1453
    %v2209 = vunpack.c.l.b16 %v1454
    %v2210 = vunpack.c.h.b16 %v1454
    %v2211 = vunpack.c.l.b16 %v1455
    %v2212 = vunpack.c.h.b16 %v1455
    %v2213 = vunpack.c.l.b16 %v1456
    %v2214 = vunpack.c.h.b16 %v1456
    %v2215 = vunpack.c.l.b16 %v1457
    %v2216 = vunpack.c.h.b16 %v1457
    %v2217 = vunpack.c.l.b16 %v1458
    %v2218 = vunpack.c.h.b16 %v1458
    %v2219 = vunpack.c.l.b16 %v1459
    %v2220 = vunpack.c.h.b16 %v1459
    %v2221 = vunpack.c.l.b16 %v1460
    %v2222 = vunpack.c.h.b16 %v1460
    %v2223 = vunpack.c.l.b16 %v1461
    %v2224 = vunpack.c.h.b16 %v1461
    %v2225 = vunpack.c.l.b16 %v1462
    %v2226 = vunpack.c.h.b16 %v1462
    %v2227 = vunpack.c.l.b16 %v1463
    %v2228 = vunpack.c.h.b16 %v1463
    %v2229 = vunpack.c.l.b16 %v1464
    %v2230 = vunpack.c.h.b16 %v1464
    %v2231 = vunpack.c.l.b16 %v1465
    %v2232 = vunpack.c.h.b16 %v1465
    %v2233 = vunpack.c.l.b16 %v1466
    %v2234 = vunpack.c.h.b16 %v1466
    %v2235 = vunpack.c.l.b16 %v1467
    %v2236 = vunpack.c.h.b16 %v1467
    %v2237 = vunpack.c.l.b16 %v1468
    %v2238 = vunpack.c.h.b16 %v1468
    %v2239 = vunpack.c.l.b16 %v1469
    %v2240 = vunpack.c.h.b16 %v1469
    %v2241 = vunpack.c.l.b16 %v1470
    %v2242 = vunpack.c.h.b16 %v1470
    %v2243 = vunpack.c.l.b16 %v1471
    %v2244 = vunpack.c.h.b16 %v1471
    %v2245 = vunpack.c.l.b16 %v1472
    %v2246 = vunpack.c.h.b16 %v1472
    %v2247 = vunpack.c.l.b16 %v1473
    %v2248 = vunpack.c.h.b16 %v1473
    %v2249 = vunpack.c.l.b16 %v1474
    %v2250 = vunpack.c.h.b16 %v1474
    %v2251 = vunpack.c.l.b16 %v1475
    %v2252 = vunpack.c.h.b16 %v1475
    %v2253 = vunpack.c.l.b16 %v1476
    %v2254 = vunpack.c.h.b16 %v1476
    %v2255 = vunpack.c.l.b16 %v1477
    %v2256 = vunpack.c.h.b16 %v1477
    %v2257 = vunpack.c.l.b16 %v1478
    %v2258 = vunpack.c.h.b16 %v1478
    %v2259 = vunpack.c.l.b16 %v1479
    %v2260 = vunpack.c.h.b16 %v1479
    %v2261 = vunpack.c.l.b16 %v1480
    %v2262 = vunpack.c.h.b16 %v1480
    %v2263 = vunpack.c.l.b16 %v1481
    %v2264 = vunpack.c.h.b16 %v1481
    %v2265 = vunpack.c.l.b16 %v1482
    %v2266 = vunpack.c.h.b16 %v1482
    %v2267 = vunpack.c.l.b16 %v1483
    %v2268 = vunpack.c.h.b16 %v1483
    %v2269 = vunpack.c.l.b16 %v1484
    %v2270 = vunpack.c.h.b16 %v1484
    %v2271 = vunpack.c.l.b16 %v1485
    %v2272 = vunpack.c.h.b16 %v1485
    %v2273 = vunpack.c.l.b16 %v1486
    %v2274 = vunpack.c.h.b16 %v1486
    %v2275 = vunpack.c.l.b16 %v1487
    %v2276 = vunpack.c.h.b16 %v1487
    %v2277 = vunpack.c.l.b16 %v1488
    %v2278 = vunpack.c.h.b16 %v1488
    %v2279 = vpack.c.b16 %v1771, %v1767
    %v2280 = vpack.c.b16 %v1772, %v1768
    %v2281 = vpack.c.b16 %v1773, %v1769
    %v2282 = vpack.c.b16 %v1774, %v1770
    %v2283 = vpack.c.b16 %v1779, %v1775
    %v2284 = vpack.c.b16 %v1780, %v1776
    %v2285 = vpack.c.b16 %v1781, %v1777
    %v2286 = vpack.c.b16 %v1782, %v1778
    %v2287 = vpack.c.b16 %v1787, %v1783
    %v2288 = vpack.c.b16 %v1788, %v1784
    %v2289 = vpack.c.b16 %v1789, %v1785
    %v2290 = vpack.c.b16 %v1790, %v1786
    %v2291 = vpack.c.b16 %v1795, %v1791
    %v2292 = vpack.c.b16 %v1796, %v1792
    %v2293 = vpack.c.b16 %v1797, %v1793
    %v2294 = vpack.c.b16 %v1798, %v1794
    %v2295 = vpack.c.b16 %v1803, %v1799
    %v2296 = vpack.c.b16 %v1804, %v1800
    %v2297 = vpack.c.b16 %v1805, %v1801
    %v2298 = vpack.c.b16 %v1806, %v1802
    %v2299 = vpack.c.b16 %v1811, %v1807
    %v2300 = vpack.c.b16 %v1812, %v1808
    %v2301 = vpack.c.b16 %v1813, %v1809
    %v2302 = vpack.c.b16 %v1814, %v1810
    %v2303 = vpack.c.b16 %v1819, %v1815
    %v2304 = vpack.c.b16 %v1820, %v1816
    %v2305 = vpack.c.b16 %v1821, %v1817
    %v2306 = vpack.c.b16 %v1822, %v1818
    %v2307 = vpack.c.b16 %v1827, %v1823
    %v2308 = vpack.c.b16 %v1828, %v1824
    %v2309 = vpack.c.b16 %v1829, %v1825
    %v2310 = vpack.c.b16 %v1830, %v1826
    %v2311 = vpack.c.b16 %v1835, %v1831
    %v2312 = vpack.c.b16 %v1836, %v1832
    %v2313 = vpack.c.b16 %v1837, %v1833
    %v2314 = vpack.c.b16 %v1838, %v1834
    %v2315 = vpack.c.b16 %v1843, %v1839
    %v2316 = vpack.c.b16 %v1844, %v1840
    %v2317 = vpack.c.b16 %v1845, %v1841
    %v2318 = vpack.c.b16 %v1846, %v1842
    %v2319 = vpack.c.b16 %v1851, %v1847
    %v2320 = vpack.c.b16 %v1852, %v1848
    %v2321 = vpack.c.b16 %v1853, %v1849
    %v2322 = vpack.c.b16 %v1854, %v1850
    %v2323 = vpack.c.b16 %v1859, %v1855
    %v2324 = vpack.c.b16 %v1860, %v1856
    %v2325 = vpack.c.b16 %v1861, %v1857
    %v2326 = vpack.c.b16 %v1862, %v1858
    %v2327 = vpack.c.b16 %v1867, %v1863
    %v2328 = vpack.c.b16 %v1868, %v1864
    %v2329 = vpack.c.b16 %v1869, %v1865
    %v2330 = vpack.c.b16 %v1870, %v1866
    %v2331 = vpack.c.b16 %v1875, %v1871
    %v2332 = vpack.c.b16 %v1876, %v1872
    %v2333 = vpack.c.b16 %v1877, %v1873
    %v2334 = vpack.c.b16 %v1878, %v1874
    %v2335 = vpack.c.b16 %v1883, %v1879
    %v2336 = vpack.c.b16 %v1884, %v1880
    %v2337 = vpack.c.b16 %v1885, %v1881
    %v2338 = vpack.c.b16 %v1886, %v1882
    %v2339 = vpack.c.b16 %v1891, %v1887
    %v2340 = vpack.c.b16 %v1892, %v1888
    %v2341 = vpack.c.b16 %v1893, %v1889
    %v2342 = vpack.c.b16 %v1894, %v1890
    %v2343 = vpack.c.b16 %v1899, %v1895
    %v2344 = vpack.c.b16 %v1900, %v1896
    %v2345 = vpack.c.b16 %v1901, %v1897
    %v2346 = vpack.c.b16 %v1902, %v1898
    %v2347 = vpack.c.b16 %v1907, %v1903
    %v2348 = vpack.c.b16 %v1908, %v1904
    %v2349 = vpack.c.b16 %v1909, %v1905
    %v2350 = vpack.c.b16 %v1910, %v1906
    %v2351 = vpack.c.b16 %v1915, %v1911
    %v2352 = vpack.c.b16 %v1916, %v1912
    %v2353 = vpack.c.b16 %v1917, %v1913
    %v2354 = vpack.c.b16 %v1918, %v1914
    %v2355 = vpack.c.b16 %v1923, %v1919
    %v2356 = vpack.c.b16 %v1924, %v1920
    %v2357 = vpack.c.b16 %v1925, %v1921
    %v2358 = vpack.c.b16 %v1926, %v1922
    %v2359 = vpack.c.b16 %v1931, %v1927
    %v2360 = vpack.c.b16 %v1932, %v1928
    %v2361 = vpack.c.b16 %v1933, %v1929
    %v2362 = vpack.c.b16 %v1934, %v1930
    %v2363 = vpack.c.b16 %v1939, %v1935
    %v2364 = vpack.c.b16 %v1940, %v1936
    %v2365 = vpack.c.b16 %v1941, %v1937
    %v2366 = vpack.c.b16 %v1942, %v1938
    %v2367 = vpack.c.b16 %v1947, %v1943
    %v2368 = vpack.c.b16 %v1948, %v1944
    %v2369 = vpack.c.b16 %v1949, %v1945
    %v2370 = vpack.c.b16 %v1950, %v1946
    %v2371 = vpack.c.b16 %v1955, %v1951
    %v2372 = vpack.c.b16 %v1956, %v1952
    %v2373 = vpack.c.b16 %v1957, %v1953
    %v2374 = vpack.c.b16 %v1958, %v1954
    %v2375 = vpack.c.b16 %v1963, %v1959
    %v2376 = vpack.c.b16 %v1964, %v1960
    %v2377 = vpack.c.b16 %v1965, %v1961
    %v2378 = vpack.c.b16 %v1966, %v1962
    %v2379 = vpack.c.b16 %v1971, %v1967
    %v2380 = vpack.c.b16 %v1972, %v1968
    %v2381 = vpack.c.b16 %v1973, %v1969
    %v2382 = vpack.c.b16 %v1974, %v1970
    %v2383 = vpack.c.b16 %v1979, %v1975
    %v2384 = vpack.c.b16 %v1980, %v1976
    %v2385 = vpack.c.b16 %v1981, %v1977
    %v2386 = vpack.c.b16 %v1982, %v1978
    %v2387 = vpack.c.b16 %v1987, %v1983
    %v2388 = vpack.c.b16 %v1988, %v1984
    %v2389 = vpack.c.b16 %v1989, %v1985
    %v2390 = vpack.c.b16 %v1990, %v1986
    %v2391 = vpack.c.b16 %v1995, %v1991
    %v2392 = vpack.c.b16 %v1996, %v1992
    %v2393 = vpack.c.b16 %v1997, %v1993
    %v2394 = vpack.c.b16 %v1998, %v1994
    %v2395 = vpack.c.b16 %v2003, %v1999
    %v2396 = vpack.c.b16 %v2004, %v2000
    %v2397 = vpack.c.b16 %v2005, %v2001
    %v2398 = vpack.c.b16 %v2006, %v2002
    %v2399 = vpack.c.b16 %v2011, %v2007
    %v2400 = vpack.c.b16 %v2012, %v2008
    %v2401 = vpack.c.b16 %v2013, %v2009
    %v2402 = vpack.c.b16 %v2014, %v2010
    %v2403 = vpack.c.b16 %v2019, %v2015
    %v2404 = vpack.c.b16 %v2020, %v2016
    %v2405 = vpack.c.b16 %v2021, %v2017
    %v2406 = vpack.c.b16 %v2022, %v2018
    %v2407 = vpack.c.b16 %v2027, %v2023
    %v2408 = vpack.c.b16 %v2028, %v2024
    %v2409 = vpack.c.b16 %v2029, %v2025
    %v2410 = vpack.c.b16 %v2030, %v2026
    %v2411 = vpack.c.b16 %v2035, %v2031
    %v2412 = vpack.c.b16 %v2036, %v2032
    %v2413 = vpack.c.b16 %v2037, %v2033
    %v2414 = vpack.c.b16 %v2038, %v2034
    %v2415 = vpack.c.b16 %v2043, %v2039
    %v2416 = vpack.c.b16 %v2044, %v2040
    %v2417 = vpack.c.b16 %v2045, %v2041
    %v2418 = vpack.c.b16 %v2046, %v2042
    %v2419 = vpack.c.b16 %v2051, %v2047
    %v2420 = vpack.c.b16 %v2052, %v2048
    %v2421 = vpack.c.b16 %v2053, %v2049
    %v2422 = vpack.c.b16 %v2054, %v2050
    %v2423 = vpack.c.b16 %v2059, %v2055
    %v2424 = vpack.c.b16 %v2060, %v2056
    %v2425 = vpack.c.b16 %v2061, %v2057
    %v2426 = vpack.c.b16 %v2062, %v2058
    %v2427 = vpack.c.b16 %v2067, %v2063
    %v2428 = vpack.c.b16 %v2068, %v2064
    %v2429 = vpack.c.b16 %v2069, %v2065
    %v2430 = vpack.c.b16 %v2070, %v2066
    %v2431 = vpack.c.b16 %v2075, %v2071
    %v2432 = vpack.c.b16 %v2076, %v2072
    %v2433 = vpack.c.b16 %v2077, %v2073
    %v2434 = vpack.c.b16 %v2078, %v2074
    %v2435 = vpack.c.b16 %v2083, %v2079
    %v2436 = vpack.c.b16 %v2084, %v2080
    %v2437 = vpack.c.b16 %v2085, %v2081
    %v2438 = vpack.c.b16 %v2086, %v2082
    %v2439 = vpack.c.b16 %v2091, %v2087
    %v2440 = vpack.c.b16 %v2092, %v2088
    %v2441 = vpack.c.b16 %v2093, %v2089
    %v2442 = vpack.c.b16 %v2094, %v2090
    %v2443 = vpack.c.b16 %v2099, %v2095
    %v2444 = vpack.c.b16 %v2100, %v2096
    %v2445 = vpack.c.b16 %v2101, %v2097
    %v2446 = vpack.c.b16 %v2102, %v2098
    %v2447 = vpack.c.b16 %v2107, %v2103
    %v2448 = vpack.c.b16 %v2108, %v2104
    %v2449 = vpack.c.b16 %v2109, %v2105
    %v2450 = vpack.c.b16 %v2110, %v2106
    %v2451 = vpack.c.b16 %v2115, %v2111
    %v2452 = vpack.c.b16 %v2116, %v2112
    %v2453 = vpack.c.b16 %v2117, %v2113
    %v2454 = vpack.c.b16 %v2118, %v2114
    %v2455 = vpack.c.b16 %v2123, %v2119
    %v2456 = vpack.c.b16 %v2124, %v2120
    %v2457 = vpack.c.b16 %v2125, %v2121
    %v2458 = vpack.c.b16 %v2126, %v2122
    %v2459 = vpack.c.b16 %v2131, %v2127
    %v2460 = vpack.c.b16 %v2132, %v2128
    %v2461 = vpack.c.b16 %v2133, %v2129
    %v2462 = vpack.c.b16 %v2134, %v2130
    %v2463 = vpack.c.b16 %v2139, %v2135
    %v2464 = vpack.c.b16 %v2140, %v2136
    %v2465 = vpack.c.b16 %v2141, %v2137
    %v2466 = vpack.c.b16 %v2142, %v2138
    %v2467 = vpack.c.b16 %v2147, %v2143
    %v2468 = vpack.c.b16 %v2148, %v2144
    %v2469 = vpack.c.b16 %v2149, %v2145
    %v2470 = vpack.c.b16 %v2150, %v2146
    %v2471 = vpack.c.b16 %v2155, %v2151
    %v2472 = vpack.c.b16 %v2156, %v2152
    %v2473 = vpack.c.b16 %v2157, %v2153
    %v2474 = vpack.c.b16 %v2158, %v2154
    %v2475 = vpack.c.b16 %v2163, %v2159
    %v2476 = vpack.c.b16 %v2164, %v2160
    %v2477 = vpack.c.b16 %v2165, %v2161
    %v2478 = vpack.c.b16 %v2166, %v2162
    %v2479 = vpack.c.b16 %v2171, %v2167
    %v2480 = vpack.c.b16 %v2172, %v2168
    %v2481 = vpack.c.b16 %v2173, %v2169
    %v2482 = vpack.c.b16 %v2174, %v2170
    %v2483 = vpack.c.b16 %v2179, %v2175
    %v2484 = vpack.c.b16 %v2180, %v2176
    %v2485 = vpack.c.b16 %v2181, %v2177
    %v2486 = vpack.c.b16 %v2182, %v2178
    %v2487 = vpack.c.b16 %v2187, %v2183
    %v2488 = vpack.c.b16 %v2188, %v2184
    %v2489 = vpack.c.b16 %v2189, %v2185
    %v2490 = vpack.c.b16 %v2190, %v2186
    %v2491 = vpack.c.b16 %v2195, %v2191
    %v2492 = vpack.c.b16 %v2196, %v2192
    %v2493 = vpack.c.b16 %v2197, %v2193
    %v2494 = vpack.c.b16 %v2198, %v2194
    %v2495 = vpack.c.b16 %v2203, %v2199
    %v2496 = vpack.c.b16 %v2204, %v2200
    %v2497 = vpack.c.b16 %v2205, %v2201
    %v2498 = vpack.c.b16 %v2206, %v2202
    %v2499 = vpack.c.b16 %v2211, %v2207
    %v2500 = vpack.c.b16 %v2212, %v2208
    %v2501 = vpack.c.b16 %v2213, %v2209
    %v2502 = vpack.c.b16 %v2214, %v2210
    %v2503 = vpack.c.b16 %v2219, %v2215
    %v2504 = vpack.c.b16 %v2220, %v2216
    %v2505 = vpack.c.b16 %v2221, %v2217
    %v2506 = vpack.c.b16 %v2222, %v2218
    %v2507 = vpack.c.b16 %v2227, %v2223
    %v2508 = vpack.c.b16 %v2228, %v2224
    %v2509 = vpack.c.b16 %v2229, %v2225
    %v2510 = vpack.c.b16 %v2230, %v2226
    %v2511 = vpack.c.b16 %v2235, %v2231
    %v2512 = vpack.c.b16 %v2236, %v2232
    %v2513 = vpack.c.b16 %v2237, %v2233
    %v2514 = vpack.c.b16 %v2238, %v2234
    %v2515 = vpack.c.b16 %v2243, %v2239
    %v2516 = vpack.c.b16 %v2244, %v2240
    %v2517 = vpack.c.b16 %v2245, %v2241
    %v2518 = vpack.c.b16 %v2246, %v2242
    %v2519 = vpack.c.b16 %v2251, %v2247
    %v2520 = vpack.c.b16 %v2252, %v2248
    %v2521 = vpack.c.b16 %v2253, %v2249
    %v2522 = vpack.c.b16 %v2254, %v2250
    %v2523 = vpack.c.b16 %v2259, %v2255
    %v2524 = vpack.c.b16 %v2260, %v2256
    %v2525 = vpack.c.b16 %v2261, %v2257
    %v2526 = vpack.c.b16 %v2262, %v2258
    %v2527 = vpack.c.b16 %v2267, %v2263
    %v2528 = vpack.c.b16 %v2268, %v2264
    %v2529 = vpack.c.b16 %v2269, %v2265
    %v2530 = vpack.c.b16 %v2270, %v2266
    %v2531 = vpack.c.b16 %v2275, %v2271
    %v2532 = vpack.c.b16 %v2276, %v2272
    %v2533 = vpack.c.b16 %v2277, %v2273
    %v2534 = vpack.c.b16 %v2278, %v2274
    %2791 = vmatprep.subr.bf16.mxu0 %v2280
    %2792 = vmatpush1.bf16.msra.mxu0 %v2279
    %2793 = vmatprep.subr.bf16.mxu0 %v2284
    %2794 = vmatpush1.bf16.msra.mxu0 %v2283
    %2795 = vmatprep.subr.bf16.mxu0 %v2288
    %2796 = vmatpush1.bf16.msra.mxu0 %v2287
    %2797 = vmatprep.subr.bf16.mxu0 %v2292
    %2798 = vmatpush1.bf16.msra.mxu0 %v2291
    %2799 = vmatprep.subr.bf16.mxu0 %v2296
    %2800 = vmatpush1.bf16.msra.mxu0 %v2295
    %2801 = vmatprep.subr.bf16.mxu0 %v2300
    %2802 = vmatpush1.bf16.msra.mxu0 %v2299
    %2803 = vmatprep.subr.bf16.mxu0 %v2304
    %2804 = vmatpush1.bf16.msra.mxu0 %v2303
    %2805 = vmatprep.subr.bf16.mxu0 %v2308
    %2806 = vmatpush1.bf16.msra.mxu0 %v2307
    %2807 = vmatprep.subr.bf16.mxu0 %v2312
    %2808 = vmatpush1.bf16.msra.mxu0 %v2311
    %2809 = vmatprep.subr.bf16.mxu0 %v2316
    %2810 = vmatpush1.bf16.msra.mxu0 %v2315
    %2811 = vmatprep.subr.bf16.mxu0 %v2320
    %2812 = vmatpush1.bf16.msra.mxu0 %v2319
    %2813 = vmatprep.subr.bf16.mxu0 %v2324
    %2814 = vmatpush1.bf16.msra.mxu0 %v2323
    %2815 = vmatprep.subr.bf16.mxu0 %v2328
    %2816 = vmatpush1.bf16.msra.mxu0 %v2327
    %2817 = vmatprep.subr.bf16.mxu0 %v2332
    %2818 = vmatpush1.bf16.msra.mxu0 %v2331
    %2819 = vmatprep.subr.bf16.mxu0 %v2336
    %2820 = vmatpush1.bf16.msra.mxu0 %v2335
    %2821 = vmatprep.subr.bf16.mxu0 %v2340
    %2822 = vmatpush1.bf16.msra.mxu0 %v2339
    %2823 = vmatprep.mubr.bf16.mxu0 %v1226
    %2824 = vmatmul.mubr.bf16.gmra.mrb[0].mxu0 %v1225
    %v2825 = vpop.f32.mrb[0].mxu0
    %v2826 = vadd.f32 %v1494, %v2825
    %v2827 = vpop.f32.mrb[0].mxu0
    %v2828 = vadd.f32 %v1498, %v2827
    %v2829 = vpop.f32.mrb[0].mxu0
    %v2830 = vpop.f32.mrb[0].mxu0
    %2831 = vdwg.mxu0
    %2832 = vmatprep.subr.bf16.mxu0 %v2344
    %2833 = vmatpush1.bf16.msra.mxu0 %v2343
    %2834 = vmatprep.subr.bf16.mxu0 %v2348
    %2835 = vmatpush1.bf16.msra.mxu0 %v2347
    %2836 = vmatprep.subr.bf16.mxu0 %v2352
    %2837 = vmatpush1.bf16.msra.mxu0 %v2351
    %2838 = vmatprep.subr.bf16.mxu0 %v2356
    %2839 = vmatpush1.bf16.msra.mxu0 %v2355
    %2840 = vmatprep.subr.bf16.mxu0 %v2360
    %2841 = vmatpush1.bf16.msra.mxu0 %v2359
    %2842 = vmatprep.subr.bf16.mxu0 %v2364
    %2843 = vmatpush1.bf16.msra.mxu0 %v2363
    %2844 = vmatprep.subr.bf16.mxu0 %v2368
    %2845 = vmatpush1.bf16.msra.mxu0 %v2367
    %2846 = vmatprep.subr.bf16.mxu0 %v2372
    %2847 = vmatpush1.bf16.msra.mxu0 %v2371
    %2848 = vmatprep.subr.bf16.mxu0 %v2376
    %2849 = vmatpush1.bf16.msra.mxu0 %v2375
    %2850 = vmatprep.subr.bf16.mxu0 %v2380
    %2851 = vmatpush1.bf16.msra.mxu0 %v2379
    %2852 = vmatprep.subr.bf16.mxu0 %v2384
    %2853 = vmatpush1.bf16.msra.mxu0 %v2383
    %2854 = vmatprep.subr.bf16.mxu0 %v2388
    %2855 = vmatpush1.bf16.msra.mxu0 %v2387
    %2856 = vmatprep.subr.bf16.mxu0 %v2392
    %2857 = vmatpush1.bf16.msra.mxu0 %v2391
    %2858 = vmatprep.subr.bf16.mxu0 %v2396
    %2859 = vmatpush1.bf16.msra.mxu0 %v2395
    %2860 = vmatprep.subr.bf16.mxu0 %v2400
    %2861 = vmatpush1.bf16.msra.mxu0 %v2399
    %2862 = vmatprep.subr.bf16.mxu0 %v2404
    %2863 = vmatpush1.bf16.msra.mxu0 %v2403
    %2864 = vmatprep.mubr.bf16.mxu0 %v1228
    %2865 = vmatmul.mubr.bf16.gmra.mrb[0].mxu0 %v1227
    %v2866 = vpop.f32.mrb[0].mxu0
    %v2867 = vadd.f32 %v2826, %v2866
    %v2868 = vpop.f32.mrb[0].mxu0
    %v2869 = vadd.f32 %v2828, %v2868
    %v2870 = vpop.f32.mrb[0].mxu0
    %v2871 = vpop.f32.mrb[0].mxu0
    %2872 = vdwg.mxu0
    %2873 = vmatprep.subr.bf16.mxu0 %v2408
    %2874 = vmatpush1.bf16.msra.mxu0 %v2407
    %2875 = vmatprep.subr.bf16.mxu0 %v2412
    %2876 = vmatpush1.bf16.msra.mxu0 %v2411
    %2877 = vmatprep.subr.bf16.mxu0 %v2416
    %2878 = vmatpush1.bf16.msra.mxu0 %v2415
    %2879 = vmatprep.subr.bf16.mxu0 %v2420
    %2880 = vmatpush1.bf16.msra.mxu0 %v2419
    %2881 = vmatprep.subr.bf16.mxu0 %v2424
    %2882 = vmatpush1.bf16.msra.mxu0 %v2423
    %2883 = vmatprep.subr.bf16.mxu0 %v2428
    %2884 = vmatpush1.bf16.msra.mxu0 %v2427
    %2885 = vmatprep.subr.bf16.mxu0 %v2432
    %2886 = vmatpush1.bf16.msra.mxu0 %v2431
    %2887 = vmatprep.subr.bf16.mxu0 %v2436
    %2888 = vmatpush1.bf16.msra.mxu0 %v2435
    %2889 = vmatprep.subr.bf16.mxu0 %v2440
    %2890 = vmatpush1.bf16.msra.mxu0 %v2439
    %2891 = vmatprep.subr.bf16.mxu0 %v2444
    %2892 = vmatpush1.bf16.msra.mxu0 %v2443
    %2893 = vmatprep.subr.bf16.mxu0 %v2448
    %2894 = vmatpush1.bf16.msra.mxu0 %v2447
    %2895 = vmatprep.subr.bf16.mxu0 %v2452
    %2896 = vmatpush1.bf16.msra.mxu0 %v2451
    %2897 = vmatprep.subr.bf16.mxu0 %v2456
    %2898 = vmatpush1.bf16.msra.mxu0 %v2455
    %2899 = vmatprep.subr.bf16.mxu0 %v2460
    %2900 = vmatpush1.bf16.msra.mxu0 %v2459
    %2901 = vmatprep.subr.bf16.mxu0 %v2464
    %2902 = vmatpush1.bf16.msra.mxu0 %v2463
    %2903 = vmatprep.subr.bf16.mxu0 %v2468
    %2904 = vmatpush1.bf16.msra.mxu0 %v2467
    %2905 = vmatprep.mubr.bf16.mxu0 %v1230
    %2906 = vmatmul.mubr.bf16.gmra.mrb[0].mxu0 %v1229
    %v2907 = vpop.f32.mrb[0].mxu0
    %v2908 = vadd.f32 %v2867, %v2907
    %v2909 = vpop.f32.mrb[0].mxu0
    %v2910 = vadd.f32 %v2869, %v2909
    %v2911 = vpop.f32.mrb[0].mxu0
    %v2912 = vpop.f32.mrb[0].mxu0
    %2913 = vdwg.mxu0
    %2914 = vmatprep.subr.bf16.mxu0 %v2472
    %2915 = vmatpush1.bf16.msra.mxu0 %v2471
    %2916 = vmatprep.subr.bf16.mxu0 %v2476
    %2917 = vmatpush1.bf16.msra.mxu0 %v2475
    %2918 = vmatprep.subr.bf16.mxu0 %v2480
    %2919 = vmatpush1.bf16.msra.mxu0 %v2479
    %2920 = vmatprep.subr.bf16.mxu0 %v2484
    %2921 = vmatpush1.bf16.msra.mxu0 %v2483
    %2922 = vmatprep.subr.bf16.mxu0 %v2488
    %2923 = vmatpush1.bf16.msra.mxu0 %v2487
    %2924 = vmatprep.subr.bf16.mxu0 %v2492
    %2925 = vmatpush1.bf16.msra.mxu0 %v2491
    %2926 = vmatprep.subr.bf16.mxu0 %v2496
    %2927 = vmatpush1.bf16.msra.mxu0 %v2495
    %2928 = vmatprep.subr.bf16.mxu0 %v2500
    %2929 = vmatpush1.bf16.msra.mxu0 %v2499
    %2930 = vmatprep.subr.bf16.mxu0 %v2504
    %2931 = vmatpush1.bf16.msra.mxu0 %v2503
    %2932 = vmatprep.subr.bf16.mxu0 %v2508
    %2933 = vmatpush1.bf16.msra.mxu0 %v2507
    %2934 = vmatprep.subr.bf16.mxu0 %v2512
    %2935 = vmatpush1.bf16.msra.mxu0 %v2511
    %2936 = vmatprep.subr.bf16.mxu0 %v2516
    %2937 = vmatpush1.bf16.msra.mxu0 %v2515
    %2938 = vmatprep.subr.bf16.mxu0 %v2520
    %2939 = vmatpush1.bf16.msra.mxu0 %v2519
    %2940 = vmatprep.subr.bf16.mxu0 %v2524
    %2941 = vmatpush1.bf16.msra.mxu0 %v2523
    %2942 = vmatprep.subr.bf16.mxu0 %v2528
    %2943 = vmatpush1.bf16.msra.mxu0 %v2527
    %2944 = vmatprep.subr.bf16.mxu0 %v2532
    %2945 = vmatpush1.bf16.msra.mxu0 %v2531
    %2946 = vmatprep.mubr.bf16.mxu0 %v1232
    %2947 = vmatmul.mubr.bf16.gmra.mrb[0].mxu0 %v1231
    %v2948 = vpop.f32.mrb[0].mxu0
    %v2949 = vadd.f32 %v2908, %v2948
    %v2950 = vpop.f32.mrb[0].mxu0
    %v2951 = vadd.f32 %v2910, %v2950
    %v2952 = vpop.f32.mrb[0].mxu0
    %v2953 = vpop.f32.mrb[0].mxu0
    %2954 = vdwg.mxu0
    %2955 = vmatprep.subr.bf16.mxu0 %v2282
    %2956 = vmatpush1.bf16.msra.mxu0 %v2281
    %2957 = vmatprep.subr.bf16.mxu0 %v2286
    %2958 = vmatpush1.bf16.msra.mxu0 %v2285
    %2959 = vmatprep.subr.bf16.mxu0 %v2290
    %2960 = vmatpush1.bf16.msra.mxu0 %v2289
    %2961 = vmatprep.subr.bf16.mxu0 %v2294
    %2962 = vmatpush1.bf16.msra.mxu0 %v2293
    %2963 = vmatprep.subr.bf16.mxu0 %v2298
    %2964 = vmatpush1.bf16.msra.mxu0 %v2297
    %2965 = vmatprep.subr.bf16.mxu0 %v2302
    %2966 = vmatpush1.bf16.msra.mxu0 %v2301
    %2967 = vmatprep.subr.bf16.mxu0 %v2306
    %2968 = vmatpush1.bf16.msra.mxu0 %v2305
    %2969 = vmatprep.subr.bf16.mxu0 %v2310
    %2970 = vmatpush1.bf16.msra.mxu0 %v2309
    %2971 = vmatprep.subr.bf16.mxu0 %v2314
    %2972 = vmatpush1.bf16.msra.mxu0 %v2313
    %2973 = vmatprep.subr.bf16.mxu0 %v2318
    %2974 = vmatpush1.bf16.msra.mxu0 %v2317
    %2975 = vmatprep.subr.bf16.mxu0 %v2322
    %2976 = vmatpush1.bf16.msra.mxu0 %v2321
    %2977 = vmatprep.subr.bf16.mxu0 %v2326
    %2978 = vmatpush1.bf16.msra.mxu0 %v2325
    %2979 = vmatprep.subr.bf16.mxu0 %v2330
    %2980 = vmatpush1.bf16.msra.mxu0 %v2329
    %2981 = vmatprep.subr.bf16.mxu0 %v2334
    %2982 = vmatpush1.bf16.msra.mxu0 %v2333
    %2983 = vmatprep.subr.bf16.mxu0 %v2338
    %2984 = vmatpush1.bf16.msra.mxu0 %v2337
    %2985 = vmatprep.subr.bf16.mxu0 %v2342
    %2986 = vmatpush1.bf16.msra.mxu0 %v2341
    %2987 = vmatprep.mubr.bf16.mxu0 %v1226
    %2988 = vmatmul.mubr.bf16.gmra.mrb[0].mxu0 %v1225
    %v2989 = vpop.f32.mrb[0].mxu0
    %v2990 = vadd.f32 %v1502, %v2989
    %v2991 = vpop.f32.mrb[0].mxu0
    %v2992 = vadd.f32 %v1506, %v2991
    %v2993 = vpop.f32.mrb[0].mxu0
    %v2994 = vpop.f32.mrb[0].mxu0
    %2995 = vdwg.mxu0
    %2996 = vmatprep.subr.bf16.mxu0 %v2346
    %2997 = vmatpush1.bf16.msra.mxu0 %v2345
    %2998 = vmatprep.subr.bf16.mxu0 %v2350
    %2999 = vmatpush1.bf16.msra.mxu0 %v2349
    %3000 = vmatprep.subr.bf16.mxu0 %v2354
    %3001 = vmatpush1.bf16.msra.mxu0 %v2353
    %3002 = vmatprep.subr.bf16.mxu0 %v2358
    %3003 = vmatpush1.bf16.msra.mxu0 %v2357
    %3004 = vmatprep.subr.bf16.mxu0 %v2362
    %3005 = vmatpush1.bf16.msra.mxu0 %v2361
    %3006 = vmatprep.subr.bf16.mxu0 %v2366
    %3007 = vmatpush1.bf16.msra.mxu0 %v2365
    %3008 = vmatprep.subr.bf16.mxu0 %v2370
    %3009 = vmatpush1.bf16.msra.mxu0 %v2369
    %3010 = vmatprep.subr.bf16.mxu0 %v2374
    %3011 = vmatpush1.bf16.msra.mxu0 %v2373
    %3012 = vmatprep.subr.bf16.mxu0 %v2378
    %3013 = vmatpush1.bf16.msra.mxu0 %v2377
    %3014 = vmatprep.subr.bf16.mxu0 %v2382
    %3015 = vmatpush1.bf16.msra.mxu0 %v2381
    %3016 = vmatprep.subr.bf16.mxu0 %v2386
    %3017 = vmatpush1.bf16.msra.mxu0 %v2385
    %3018 = vmatprep.subr.bf16.mxu0 %v2390
    %3019 = vmatpush1.bf16.msra.mxu0 %v2389
    %3020 = vmatprep.subr.bf16.mxu0 %v2394
    %3021 = vmatpush1.bf16.msra.mxu0 %v2393
    %3022 = vmatprep.subr.bf16.mxu0 %v2398
    %3023 = vmatpush1.bf16.msra.mxu0 %v2397
    %3024 = vmatprep.subr.bf16.mxu0 %v2402
    %3025 = vmatpush1.bf16.msra.mxu0 %v2401
    %3026 = vmatprep.subr.bf16.mxu0 %v2406
    %3027 = vmatpush1.bf16.msra.mxu0 %v2405
    %3028 = vmatprep.mubr.bf16.mxu0 %v1228
    %3029 = vmatmul.mubr.bf16.gmra.mrb[0].mxu0 %v1227
    %v3030 = vpop.f32.mrb[0].mxu0
    %v3031 = vadd.f32 %v2990, %v3030
    %v3032 = vpop.f32.mrb[0].mxu0
    %v3033 = vadd.f32 %v2992, %v3032
    %v3034 = vpop.f32.mrb[0].mxu0
    %v3035 = vpop.f32.mrb[0].mxu0
    %3036 = vdwg.mxu0
    %3037 = vmatprep.subr.bf16.mxu0 %v2410
    %3038 = vmatpush1.bf16.msra.mxu0 %v2409
    %3039 = vmatprep.subr.bf16.mxu0 %v2414
    %3040 = vmatpush1.bf16.msra.mxu0 %v2413
    %3041 = vmatprep.subr.bf16.mxu0 %v2418
    %3042 = vmatpush1.bf16.msra.mxu0 %v2417
    %3043 = vmatprep.subr.bf16.mxu0 %v2422
    %3044 = vmatpush1.bf16.msra.mxu0 %v2421
    %3045 = vmatprep.subr.bf16.mxu0 %v2426
    %3046 = vmatpush1.bf16.msra.mxu0 %v2425
    %3047 = vmatprep.subr.bf16.mxu0 %v2430
    %3048 = vmatpush1.bf16.msra.mxu0 %v2429
    %3049 = vmatprep.subr.bf16.mxu0 %v2434
    %3050 = vmatpush1.bf16.msra.mxu0 %v2433
    %3051 = vmatprep.subr.bf16.mxu0 %v2438
    %3052 = vmatpush1.bf16.msra.mxu0 %v2437
    %3053 = vmatprep.subr.bf16.mxu0 %v2442
    %3054 = vmatpush1.bf16.msra.mxu0 %v2441
    %3055 = vmatprep.subr.bf16.mxu0 %v2446
    %3056 = vmatpush1.bf16.msra.mxu0 %v2445
    %3057 = vmatprep.subr.bf16.mxu0 %v2450
    %3058 = vmatpush1.bf16.msra.mxu0 %v2449
    %3059 = vmatprep.subr.bf16.mxu0 %v2454
    %3060 = vmatpush1.bf16.msra.mxu0 %v2453
    %3061 = vmatprep.subr.bf16.mxu0 %v2458
    %3062 = vmatpush1.bf16.msra.mxu0 %v2457
    %3063 = vmatprep.subr.bf16.mxu0 %v2462
    %3064 = vmatpush1.bf16.msra.mxu0 %v2461
    %3065 = vmatprep.subr.bf16.mxu0 %v2466
    %3066 = vmatpush1.bf16.msra.mxu0 %v2465
    %3067 = vmatprep.subr.bf16.mxu0 %v2470
    %3068 = vmatpush1.bf16.msra.mxu0 %v2469
    %3069 = vmatprep.mubr.bf16.mxu0 %v1230
    %3070 = vmatmul.mubr.bf16.gmra.mrb[0].mxu0 %v1229
    %v3071 = vpop.f32.mrb[0].mxu0
    %v3072 = vadd.f32 %v3031, %v3071
    %v3073 = vpop.f32.mrb[0].mxu0
    %v3074 = vadd.f32 %v3033, %v3073
    %v3075 = vpop.f32.mrb[0].mxu0
    %v3076 = vpop.f32.mrb[0].mxu0
    %3077 = vdwg.mxu0
    %3078 = vmatprep.subr.bf16.mxu0 %v2474
    %3079 = vmatpush1.bf16.msra.mxu0 %v2473
    %3080 = vmatprep.subr.bf16.mxu0 %v2478
    %3081 = vmatpush1.bf16.msra.mxu0 %v2477
    %3082 = vmatprep.subr.bf16.mxu0 %v2482
    %3083 = vmatpush1.bf16.msra.mxu0 %v2481
    %3084 = vmatprep.subr.bf16.mxu0 %v2486
    %3085 = vmatpush1.bf16.msra.mxu0 %v2485
    %3086 = vmatprep.subr.bf16.mxu0 %v2490
    %3087 = vmatpush1.bf16.msra.mxu0 %v2489
    %3088 = vmatprep.subr.bf16.mxu0 %v2494
    %3089 = vmatpush1.bf16.msra.mxu0 %v2493
    %3090 = vmatprep.subr.bf16.mxu0 %v2498
    %3091 = vmatpush1.bf16.msra.mxu0 %v2497
    %3092 = vmatprep.subr.bf16.mxu0 %v2502
    %3093 = vmatpush1.bf16.msra.mxu0 %v2501
    %3094 = vmatprep.subr.bf16.mxu0 %v2506
    %3095 = vmatpush1.bf16.msra.mxu0 %v2505
    %3096 = vmatprep.subr.bf16.mxu0 %v2510
    %3097 = vmatpush1.bf16.msra.mxu0 %v2509
    %3098 = vmatprep.subr.bf16.mxu0 %v2514
    %3099 = vmatpush1.bf16.msra.mxu0 %v2513
    %3100 = vmatprep.subr.bf16.mxu0 %v2518
    %3101 = vmatpush1.bf16.msra.mxu0 %v2517
    %3102 = vmatprep.subr.bf16.mxu0 %v2522
    %3103 = vmatpush1.bf16.msra.mxu0 %v2521
    %3104 = vmatprep.subr.bf16.mxu0 %v2526
    %3105 = vmatpush1.bf16.msra.mxu0 %v2525
    %3106 = vmatprep.subr.bf16.mxu0 %v2530
    %3107 = vmatpush1.bf16.msra.mxu0 %v2529
    %3108 = vmatprep.subr.bf16.mxu0 %v2534
    %3109 = vmatpush1.bf16.msra.mxu0 %v2533
    %3110 = vmatprep.mubr.bf16.mxu0 %v1232
    %3111 = vmatmul.mubr.bf16.gmra.mrb[0].mxu0 %v1231
    %v3112 = vpop.f32.mrb[0].mxu0
    %v3113 = vadd.f32 %v3072, %v3112
    %v3114 = vpop.f32.mrb[0].mxu0
    %v3115 = vadd.f32 %v3074, %v3114
    %v3116 = vpop.f32.mrb[0].mxu0
    %v3117 = vpop.f32.mrb[0].mxu0
    %3118 = vdwg.mxu0
    %v3119 = vmul.f32 %v2949, 0.5
    %v3120 = vmul.f32 %v2951, 0.5
    %v3121 = vmul.f32 %v3113, 0.5
    %v3122 = vmul.f32 %v3115, 0.5
    %v3123 = vmul.f32 %v2949, %v1192
    %v3124 = vmul.f32 %v2951, %v1192
    %v3125 = vmul.f32 %v3113, %v1192
    %v3126 = vmul.f32 %v3115, %v1192
    %v3127 = verf.f32.pop %v3123
    %v3128 = verf.f32.pop %v3124
    %v3129 = verf.f32.pop %v3125
    %v3130 = verf.f32.pop %v3126
    %v3131 = vadd.f32 %v3127, 1.0
    %v3132 = vadd.f32 %v3128, 1.0
    %v3133 = vadd.f32 %v3129, 1.0
    %v3134 = vadd.f32 %v3130, 1.0
    %v3135 = vmul.f32 %v3119, %v3131
    %v3136 = vmul.f32 %v3120, %v3132
    %v3137 = vmul.f32 %v3121, %v3133
    %v3138 = vmul.f32 %v3122, %v3134
    %3139 = vst [vmem:[#allocation2] sm:$0xff] %v3135
    %3140 = vst [vmem:[#allocation2 + $0x8] sm:$0xff] %v3136
    %3141 = vst [vmem:[#allocation2 + $0x10] sm:$0xff] %v3137
    %3142 = vst [vmem:[#allocation2 + $0x18] sm:$0xff] %v3138
    %v3143 = vpack.c.bf16 %v3135, %v3135
    %v3144 = vpack.c.bf16 %v3136, %v3136
    %v3145 = vpack.c.bf16 %v3137, %v3137
    %v3146 = vpack.c.bf16 %v3138, %v3138
    %v3147 = vld [vmem:[%s7] sm:$0xf]
    %v3148 = vld [vmem:[%s7 + $0x4] sm:$0xf]
    %v3149 = vld [vmem:[%s7 + $0x8] sm:$0xf]
    %v3150 = vld [vmem:[%s7 + $0xc] sm:$0xf]
    %v3151 = vld [vmem:[%s7 + $0x10] sm:$0xf]
    %v3152 = vld [vmem:[%s7 + $0x14] sm:$0xf]
    %v3153 = vld [vmem:[%s7 + $0x18] sm:$0xf]
    %v3154 = vld [vmem:[%s7 + $0x1c] sm:$0xf]
    %v3155 = vld [vmem:[%s7 + $0x20] sm:$0xf]
    %v3156 = vld [vmem:[%s7 + $0x24] sm:$0xf]
    %v3157 = vld [vmem:[%s7 + $0x28] sm:$0xf]
    %v3158 = vld [vmem:[%s7 + $0x2c] sm:$0xf]
    %v3159 = vld [vmem:[%s7 + $0x30] sm:$0xf]
    %v3160 = vld [vmem:[%s7 + $0x34] sm:$0xf]
    %v3161 = vld [vmem:[%s7 + $0x38] sm:$0xf]
    %v3162 = vld [vmem:[%s7 + $0x3c] sm:$0xf]
    %v3163 = vld [vmem:[%s7 + $0x40] sm:$0xf]
    %v3164 = vld [vmem:[%s7 + $0x44] sm:$0xf]
    %v3165 = vld [vmem:[%s7 + $0x48] sm:$0xf]
    %v3166 = vld [vmem:[%s7 + $0x4c] sm:$0xf]
    %v3167 = vld [vmem:[%s7 + $0x50] sm:$0xf]
    %v3168 = vld [vmem:[%s7 + $0x54] sm:$0xf]
    %v3169 = vld [vmem:[%s7 + $0x58] sm:$0xf]
    %v3170 = vld [vmem:[%s7 + $0x5c] sm:$0xf]
    %v3171 = vld [vmem:[%s7 + $0x60] sm:$0xf]
    %v3172 = vld [vmem:[%s7 + $0x64] sm:$0xf]
    %v3173 = vld [vmem:[%s7 + $0x68] sm:$0xf]
    %v3174 = vld [vmem:[%s7 + $0x6c] sm:$0xf]
    %v3175 = vld [vmem:[%s7 + $0x70] sm:$0xf]
    %v3176 = vld [vmem:[%s7 + $0x74] sm:$0xf]
    %v3177 = vld [vmem:[%s7 + $0x78] sm:$0xf]
    %v3178 = vld [vmem:[%s7 + $0x7c] sm:$0xf]
    %v3179 = vld [vmem:[%s7 + $0x80] sm:$0xf]
    %v3180 = vld [vmem:[%s7 + $0x84] sm:$0xf]
    %v3181 = vld [vmem:[%s7 + $0x88] sm:$0xf]
    %v3182 = vld [vmem:[%s7 + $0x8c] sm:$0xf]
    %v3183 = vld [vmem:[%s7 + $0x90] sm:$0xf]
    %v3184 = vld [vmem:[%s7 + $0x94] sm:$0xf]
    %v3185 = vld [vmem:[%s7 + $0x98] sm:$0xf]
    %v3186 = vld [vmem:[%s7 + $0x9c] sm:$0xf]
    %v3187 = vld [vmem:[%s7 + $0xa0] sm:$0xf]
    %v3188 = vld [vmem:[%s7 + $0xa4] sm:$0xf]
    %v3189 = vld [vmem:[%s7 + $0xa8] sm:$0xf]
    %v3190 = vld [vmem:[%s7 + $0xac] sm:$0xf]
    %v3191 = vld [vmem:[%s7 + $0xb0] sm:$0xf]
    %v3192 = vld [vmem:[%s7 + $0xb4] sm:$0xf]
    %v3193 = vld [vmem:[%s7 + $0xb8] sm:$0xf]
    %v3194 = vld [vmem:[%s7 + $0xbc] sm:$0xf]
    %v3195 = vld [vmem:[%s7 + $0xc0] sm:$0xf]
    %v3196 = vld [vmem:[%s7 + $0xc4] sm:$0xf]
    %v3197 = vld [vmem:[%s7 + $0xc8] sm:$0xf]
    %v3198 = vld [vmem:[%s7 + $0xcc] sm:$0xf]
    %v3199 = vld [vmem:[%s7 + $0xd0] sm:$0xf]
    %v3200 = vld [vmem:[%s7 + $0xd4] sm:$0xf]
    %v3201 = vld [vmem:[%s7 + $0xd8] sm:$0xf]
    %v3202 = vld [vmem:[%s7 + $0xdc] sm:$0xf]
    %v3203 = vld [vmem:[%s7 + $0xe0] sm:$0xf]
    %v3204 = vld [vmem:[%s7 + $0xe4] sm:$0xf]
    %v3205 = vld [vmem:[%s7 + $0xe8] sm:$0xf]
    %v3206 = vld [vmem:[%s7 + $0xec] sm:$0xf]
    %v3207 = vld [vmem:[%s7 + $0xf0] sm:$0xf]
    %v3208 = vld [vmem:[%s7 + $0xf4] sm:$0xf]
    %v3209 = vld [vmem:[%s7 + $0xf8] sm:$0xf]
    %v3210 = vld [vmem:[%s7 + $0xfc] sm:$0xf]
    %v3211 = vld [vmem:[%s8] sm:$0x1]
    %v3213 = vlaneseq
    %v3214 = vshrl.u32 %v3213, 7
    %v3215 = vsub.s32 0, %v3214
    %v3216 = vrot.slane %v3211, %v3215
    %v3282 = vunpack.c.l.b16 %v3147
    %v3283 = vunpack.c.l.b16 %v3148
    %v3284 = vunpack.c.l.b16 %v3149
    %v3285 = vunpack.c.l.b16 %v3150
    %v3286 = vunpack.c.l.b16 %v3151
    %v3287 = vunpack.c.l.b16 %v3152
    %v3288 = vunpack.c.l.b16 %v3153
    %v3289 = vunpack.c.l.b16 %v3154
    %v3290 = vunpack.c.l.b16 %v3155
    %v3291 = vunpack.c.l.b16 %v3156
    %v3292 = vunpack.c.l.b16 %v3157
    %v3293 = vunpack.c.l.b16 %v3158
    %v3294 = vunpack.c.l.b16 %v3159
    %v3295 = vunpack.c.l.b16 %v3160
    %v3296 = vunpack.c.l.b16 %v3161
    %v3297 = vunpack.c.l.b16 %v3162
    %v3298 = vunpack.c.l.b16 %v3163
    %v3299 = vunpack.c.l.b16 %v3164
    %v3300 = vunpack.c.l.b16 %v3165
    %v3301 = vunpack.c.l.b16 %v3166
    %v3302 = vunpack.c.l.b16 %v3167
    %v3303 = vunpack.c.l.b16 %v3168
    %v3304 = vunpack.c.l.b16 %v3169
    %v3305 = vunpack.c.l.b16 %v3170
    %v3306 = vunpack.c.l.b16 %v3171
    %v3307 = vunpack.c.l.b16 %v3172
    %v3308 = vunpack.c.l.b16 %v3173
    %v3309 = vunpack.c.l.b16 %v3174
    %v3310 = vunpack.c.l.b16 %v3175
    %v3311 = vunpack.c.l.b16 %v3176
    %v3312 = vunpack.c.l.b16 %v3177
    %v3313 = vunpack.c.l.b16 %v3178
    %v3314 = vunpack.c.l.b16 %v3179
    %v3315 = vunpack.c.l.b16 %v3180
    %v3316 = vunpack.c.l.b16 %v3181
    %v3317 = vunpack.c.l.b16 %v3182
    %v3318 = vunpack.c.l.b16 %v3183
    %v3319 = vunpack.c.l.b16 %v3184
    %v3320 = vunpack.c.l.b16 %v3185
    %v3321 = vunpack.c.l.b16 %v3186
    %v3322 = vunpack.c.l.b16 %v3187
    %v3323 = vunpack.c.l.b16 %v3188
    %v3324 = vunpack.c.l.b16 %v3189
    %v3325 = vunpack.c.l.b16 %v3190
    %v3326 = vunpack.c.l.b16 %v3191
    %v3327 = vunpack.c.l.b16 %v3192
    %v3328 = vunpack.c.l.b16 %v3193
    %v3329 = vunpack.c.l.b16 %v3194
    %v3330 = vunpack.c.l.b16 %v3195
    %v3331 = vunpack.c.l.b16 %v3196
    %v3332 = vunpack.c.l.b16 %v3197
    %v3333 = vunpack.c.l.b16 %v3198
    %v3334 = vunpack.c.l.b16 %v3199
    %v3335 = vunpack.c.l.b16 %v3200
    %v3336 = vunpack.c.l.b16 %v3201
    %v3337 = vunpack.c.l.b16 %v3202
    %v3338 = vunpack.c.l.b16 %v3203
    %v3339 = vunpack.c.l.b16 %v3204
    %v3340 = vunpack.c.l.b16 %v3205
    %v3341 = vunpack.c.l.b16 %v3206
    %v3342 = vunpack.c.l.b16 %v3207
    %v3343 = vunpack.c.l.b16 %v3208
    %v3344 = vunpack.c.l.b16 %v3209
    %v3345 = vunpack.c.l.b16 %v3210
    %v3346 = vpack.c.b16 %v3283, %v3282
    %v3347 = vpack.c.b16 %v3285, %v3284
    %v3348 = vpack.c.b16 %v3287, %v3286
    %v3349 = vpack.c.b16 %v3289, %v3288
    %v3350 = vpack.c.b16 %v3291, %v3290
    %v3351 = vpack.c.b16 %v3293, %v3292
    %v3352 = vpack.c.b16 %v3295, %v3294
    %v3353 = vpack.c.b16 %v3297, %v3296
    %v3354 = vpack.c.b16 %v3299, %v3298
    %v3355 = vpack.c.b16 %v3301, %v3300
    %v3356 = vpack.c.b16 %v3303, %v3302
    %v3357 = vpack.c.b16 %v3305, %v3304
    %v3358 = vpack.c.b16 %v3307, %v3306
    %v3359 = vpack.c.b16 %v3309, %v3308
    %v3360 = vpack.c.b16 %v3311, %v3310
    %v3361 = vpack.c.b16 %v3313, %v3312
    %v3362 = vpack.c.b16 %v3315, %v3314
    %v3363 = vpack.c.b16 %v3317, %v3316
    %v3364 = vpack.c.b16 %v3319, %v3318
    %v3365 = vpack.c.b16 %v3321, %v3320
    %v3366 = vpack.c.b16 %v3323, %v3322
    %v3367 = vpack.c.b16 %v3325, %v3324
    %v3368 = vpack.c.b16 %v3327, %v3326
    %v3369 = vpack.c.b16 %v3329, %v3328
    %v3370 = vpack.c.b16 %v3331, %v3330
    %v3371 = vpack.c.b16 %v3333, %v3332
    %v3372 = vpack.c.b16 %v3335, %v3334
    %v3373 = vpack.c.b16 %v3337, %v3336
    %v3374 = vpack.c.b16 %v3339, %v3338
    %v3375 = vpack.c.b16 %v3341, %v3340
    %v3376 = vpack.c.b16 %v3343, %v3342
    %v3377 = vpack.c.b16 %v3345, %v3344
    %3410 = vmatprep.subr.bf16.mxu0 0
    %3411 = vmatpush1.bf16.msra.mxu0 %v3346
    %3412 = vmatprep.subr.bf16.mxu0 0
    %3413 = vmatpush1.bf16.msra.mxu0 %v3347
    %3414 = vmatprep.subr.bf16.mxu0 0
    %3415 = vmatpush1.bf16.msra.mxu0 %v3348
    %3416 = vmatprep.subr.bf16.mxu0 0
    %3417 = vmatpush1.bf16.msra.mxu0 %v3349
    %3418 = vmatprep.subr.bf16.mxu0 0
    %3419 = vmatpush1.bf16.msra.mxu0 %v3350
    %3420 = vmatprep.subr.bf16.mxu0 0
    %3421 = vmatpush1.bf16.msra.mxu0 %v3351
    %3422 = vmatprep.subr.bf16.mxu0 0
    %3423 = vmatpush1.bf16.msra.mxu0 %v3352
    %3424 = vmatprep.subr.bf16.mxu0 0
    %3425 = vmatpush1.bf16.msra.mxu0 %v3353
    %3426 = vmatprep.subr.bf16.mxu0 0
    %3427 = vmatpush1.bf16.msra.mxu0 %v3354
    %3428 = vmatprep.subr.bf16.mxu0 0
    %3429 = vmatpush1.bf16.msra.mxu0 %v3355
    %3430 = vmatprep.subr.bf16.mxu0 0
    %3431 = vmatpush1.bf16.msra.mxu0 %v3356
    %3432 = vmatprep.subr.bf16.mxu0 0
    %3433 = vmatpush1.bf16.msra.mxu0 %v3357
    %3434 = vmatprep.subr.bf16.mxu0 0
    %3435 = vmatpush1.bf16.msra.mxu0 %v3358
    %3436 = vmatprep.subr.bf16.mxu0 0
    %3437 = vmatpush1.bf16.msra.mxu0 %v3359
    %3438 = vmatprep.subr.bf16.mxu0 0
    %3439 = vmatpush1.bf16.msra.mxu0 %v3360
    %3440 = vmatprep.subr.bf16.mxu0 0
    %3441 = vmatpush1.bf16.msra.mxu0 %v3361
    %3442 = vmatprep.mubr.bf16.mxu0 %v3144
    %3443 = vmatmul.mubr.bf16.gmra.mrb[0].mxu0 %v3143
    %v3444 = vpop.f32.mrb[0].mxu0
    %v3445 = vadd.f32 %v3216, %v3444
    %v3446 = vpop.f32.mrb[0].mxu0
    %v3447 = vpop.f32.mrb[0].mxu0
    %v3448 = vpop.f32.mrb[0].mxu0
    %3449 = vdwg.mxu0
    %3450 = vmatprep.subr.bf16.mxu0 0
    %3451 = vmatpush1.bf16.msra.mxu0 %v3362
    %3452 = vmatprep.subr.bf16.mxu0 0
    %3453 = vmatpush1.bf16.msra.mxu0 %v3363
    %3454 = vmatprep.subr.bf16.mxu0 0
    %3455 = vmatpush1.bf16.msra.mxu0 %v3364
    %3456 = vmatprep.subr.bf16.mxu0 0
    %3457 = vmatpush1.bf16.msra.mxu0 %v3365
    %3458 = vmatprep.subr.bf16.mxu0 0
    %3459 = vmatpush1.bf16.msra.mxu0 %v3366
    %3460 = vmatprep.subr.bf16.mxu0 0
    %3461 = vmatpush1.bf16.msra.mxu0 %v3367
    %3462 = vmatprep.subr.bf16.mxu0 0
    %3463 = vmatpush1.bf16.msra.mxu0 %v3368
    %3464 = vmatprep.subr.bf16.mxu0 0
    %3465 = vmatpush1.bf16.msra.mxu0 %v3369
    %3466 = vmatprep.subr.bf16.mxu0 0
    %3467 = vmatpush1.bf16.msra.mxu0 %v3370
    %3468 = vmatprep.subr.bf16.mxu0 0
    %3469 = vmatpush1.bf16.msra.mxu0 %v3371
    %3470 = vmatprep.subr.bf16.mxu0 0
    %3471 = vmatpush1.bf16.msra.mxu0 %v3372
    %3472 = vmatprep.subr.bf16.mxu0 0
    %3473 = vmatpush1.bf16.msra.mxu0 %v3373
    %3474 = vmatprep.subr.bf16.mxu0 0
    %3475 = vmatpush1.bf16.msra.mxu0 %v3374
    %3476 = vmatprep.subr.bf16.mxu0 0
    %3477 = vmatpush1.bf16.msra.mxu0 %v3375
    %3478 = vmatprep.subr.bf16.mxu0 0
    %3479 = vmatpush1.bf16.msra.mxu0 %v3376
    %3480 = vmatprep.subr.bf16.mxu0 0
    %3481 = vmatpush1.bf16.msra.mxu0 %v3377
    %3482 = vmatprep.mubr.bf16.mxu0 %v3146
    %3483 = vmatmul.mubr.bf16.gmra.mrb[0].mxu0 %v3145
    %v3484 = vpop.f32.mrb[0].mxu0
    %v3485 = vadd.f32 %v3445, %v3484
    %v3486 = vpop.f32.mrb[0].mxu0
    %v3487 = vpop.f32.mrb[0].mxu0
    %v3488 = vpop.f32.mrb[0].mxu0
    %3489 = vdwg.mxu0
    %3490 = vst [vmem:[%s9] sm:$0xff] %v3485
    // Predicated region
    $region38: #{predict_module_forward.1} parent=1 // pred_check
      _
    $region39: #{predict_module_forward.1} parent=1 // pred_check_branch
      %3492 = sbr.rel (0) target = $region41
    $region40: #{predict_module_forward.1} parent=1 // pred_region
      _
    $region41: #{predict_module_forward.1} parent=1 // pred_fallthru
      _
    // Predicated region
    $region42: #{predict_module_forward.1} parent=1 // pred_check
      _
    $region43: #{predict_module_forward.1} parent=1 // pred_check_branch
      %3494 = sbr.rel (0) target = $region45
    $region44: #{predict_module_forward.1} parent=1 // pred_region
      %s3496 = ssub.s32 512, 512
      %3497 = vsyncadd [#allocation3], %s3496
      %s3499 = sshll.u32 [#allocation2], 4
      %s3500 = int_to_ptr.vmem [resolvable:$true] %s3499
      %3502 = dma.vmem_to_hbm [thread:$0]  %s3500, 512, %s10, [#allocation3]
    $region45: #{predict_module_forward.1} parent=1 // pred_fallthru
      _
    // Predicated region
    $region46: #{predict_module_forward.1} parent=1 // pred_check
      _
    $region47: #{predict_module_forward.1} parent=1 // pred_check_branch
      %3504 = sbr.rel (0) target = $region49
    $region48: #{predict_module_forward.1} parent=1 // pred_region
      _
    $region49: #{predict_module_forward.1} parent=1 // pred_fallthru
      _
    // Predicated region
    $region50: #{predict_module_forward.1} parent=1 // pred_check
      _
    $region51: #{predict_module_forward.1} parent=1 // pred_check_branch
      %3506 = sbr.rel (0) target = $region53
    $region52: #{predict_module_forward.1} parent=1 // pred_region
      %3507 = dma.done [#allocation3], 512
    $region53: #{predict_module_forward.1} parent=1 // pred_fallthru
      _
    %3508 = vsyncpa [#allocation3], 1

</llo_original>
